<compile_context>
chip_gen: v7x
topology: tpu7x:2x2x1
jax: 0.10.0
libtpu: 0.0.40
codegen_flags: <defaults>
</compile_context>

<pallas_src>
import jax
import jax.numpy as jnp
from jax.experimental import pallas as pl
from jax.experimental.pallas import tpu as pltpu

HID = 128            # hidden dim padded 120 -> 128
NGRP = 9             # softmax group size (within-cell indices)
LANES = 128          # lane width of one slab
OUT_W = NGRP * LANES # 1152


def _round_up(n, m):
    return ((n + m - 1) // m) * m


def doku_kernel(x_ref, w1_ref, b1_ref, w2_ref, b2_ref, w3_ref, b3_ref,
                w4_ref, b4_ref, out_ref):
    # ---- MXU path in bf16 (native on v5e/v6e/v7x), f32 accumulation -------
    x = x_ref[...].astype(jnp.bfloat16)                               # (bt, 81)

    h = jnp.dot(x, w1_ref[...], preferred_element_type=jnp.float32) + b1_ref[...]
    h = jnp.tanh(h)                                                   # f32 elementwise

    h = jnp.dot(h.astype(jnp.bfloat16), w2_ref[...],
                preferred_element_type=jnp.float32) + b2_ref[...]
    h = jnp.maximum(h, 0.0)

    h = jnp.dot(h.astype(jnp.bfloat16), w3_ref[...],
                preferred_element_type=jnp.float32) + b3_ref[...]
    h = jnp.maximum(h, 0.0)

    # Fused last layer: ONE lane-packed (128 x 1152) matmul, bias added once.
    logits = jnp.dot(h.astype(jnp.bfloat16), w4_ref[...],
                     preferred_element_type=jnp.float32) + b4_ref[...]  # (bt, 1152)

    # ---- Grouped softmax over the nine lane-aligned 128-wide slabs (f32) ---
    m = logits[:, 0:LANES]
    for w in range(1, NGRP):
        m = jnp.maximum(m, logits[:, w * LANES:(w + 1) * LANES])

    # Write exp(slab - m) straight into the (VMEM-resident) output block,
    # accumulating the denominator on the fly -> no separate exps live set.
    ssum = jnp.zeros_like(m)
    for w in range(NGRP):
        e = jnp.exp(logits[:, w * LANES:(w + 1) * LANES] - m)
        out_ref[:, w * LANES:(w + 1) * LANES] = e
        ssum = ssum + e

    inv = pl.reciprocal(ssum, approx=True)        # EUP vrcp
    inv = inv * (2.0 - ssum * inv)                # one Newton step -> ~1e-6 rel

    # Normalize in place: lane-dense, unmasked 128-wide loads/stores.
    for w in range(NGRP):
        out_ref[:, w * LANES:(w + 1) * LANES] = (
            out_ref[:, w * LANES:(w + 1) * LANES] * inv)


def _choose_tiling(B, max_bt=512):
    """Pick (bt, Bp): minimize padded rows + per-step overhead, and keep
    >= 2 grid steps when the batch allows so both v7x TensorCores get work."""
    Bp8 = _round_up(B, 8)
    if Bp8 <= 128:
        return Bp8, Bp8                     # one small tile, zero/min pad
    cands = {c for c in (128, 256, 384, 512) if c <= max_bt}
    half = _round_up((Bp8 + 1) // 2, 8)
    if half <= max_bt:
        cands.add(half)                     # exact two-way split candidate
    best = None                             # (cost, bt, Bp)
    for bt in sorted(cands):
        Bp = _round_up(Bp8, bt)
        n_steps = Bp // bt
        if Bp8 >= 256 and n_steps < 2:
            continue                        # keep both v7x TCs busy
        cost = Bp + 64 * n_steps            # padded rows + ~step overhead (in rows)
        if (best is None or cost < best[0]
                or (cost == best[0] and bt > best[1])):
            best = (cost, bt, Bp)
    if best is None:
        bt = min(128, Bp8)
        return bt, _round_up(Bp8, bt)
    return best[1], best[2]


def doku_net(x, params, *, max_bt=512):
    """x: (B, 81) f32. Returns (B, 81, 9) f32 (matches PyTorch DokuNet)."""
    w1p, b1p, w2p, b2p, w3p, b3p, w4p, b4p = params
    B = x.shape[0]

    bt, Bp = _choose_tiling(B, max_bt)
    if Bp != B:
        x = jnp.pad(x, ((0, Bp - B), (0, 0)))
    n_steps = Bp // bt

    flops = 2 * Bp * (81 * HID + HID * HID + HID * HID + HID * OUT_W)
    transcendentals = Bp * (HID + NGRP * LANES + LANES)   # tanh + exp + recip
    weight_bytes = (2 * (81 * HID + 2 * HID * HID + HID * OUT_W)    # bf16 weights
                    + 4 * (3 * HID + OUT_W))                        # f32 biases
    # Weights are resident across grid steps (constant index_map): count once.
    bytes_accessed = 4 * Bp * 81 + 4 * Bp * OUT_W + weight_bytes

    out = pl.pallas_call(
        doku_kernel,
        out_shape=jax.ShapeDtypeStruct((Bp, OUT_W), jnp.float32),
        grid_spec=pltpu.PrefetchScalarGridSpec(
            num_scalar_prefetch=0,
            grid=(n_steps,),
            in_specs=[
                pl.BlockSpec((bt, 81), lambda i: (i, 0)),        # x
                pl.BlockSpec((81, HID), lambda i: (0, 0)),       # w1 (bf16, padded)
                pl.BlockSpec((1, HID), lambda i: (0, 0)),        # b1 (f32)
                pl.BlockSpec((HID, HID), lambda i: (0, 0)),      # w2 (bf16)
                pl.BlockSpec((1, HID), lambda i: (0, 0)),        # b2
                pl.BlockSpec((HID, HID), lambda i: (0, 0)),      # w3 (bf16)
                pl.BlockSpec((1, HID), lambda i: (0, 0)),        # b3
                pl.BlockSpec((HID, OUT_W), lambda i: (0, 0)),    # w4 fused (bf16)
                pl.BlockSpec((1, OUT_W), lambda i: (0, 0)),      # b4 fused (f32)
            ],
            out_specs=pl.BlockSpec((bt, OUT_W), lambda i: (i, 0)),
        ),
        compiler_params=pltpu.CompilerParams(
            dimension_semantics=("parallel",)),
        cost_estimate=pl.CostEstimate(
            flops=flops,
            transcendentals=transcendentals,
            bytes_accessed=bytes_accessed),
    )(x, w1p, b1p, w2p, b2p, w3p, b3p, w4p, b4p)

    # (Bp, 1152) -> (Bp, 9, 128): free C-contiguous reshape; drop padded
    # rows/lanes, then (B, 9, 81) -> (B, 81, 9) to match the PyTorch layout.
    # TODO(synk): consumers that can take (B, 9, 81) directly (e.g. argmax over
    # axis 1) should skip this transpose to halve output-side HBM traffic.
    out = out.reshape(Bp, NGRP, LANES)[:B, :, :81]
    return jnp.transpose(out, (0, 2, 1))


def init_params(key):
    """Deterministic init mimicking nn.Linear's U(-1/sqrt(fan_in), +...)."""
    def linear(key, fan_in, fan_out):
        kw, kb = jax.random.split(key)
        bound = 1.0 / jnp.sqrt(jnp.float32(fan_in))
        w = jax.random.uniform(kw, (fan_in, fan_out), jnp.float32, -bound, bound)
        b = jax.random.uniform(kb, (1, fan_out), jnp.float32, -bound, bound)
        return w, b

    k1, k2, k3, k4 = jax.random.split(key, 4)
    w1, b1 = linear(k1, 81, 120)
    w2, b2 = linear(k2, 120, 120)
    w3, b3 = linear(k3, 120, 120)
    w4, b4 = linear(k4, 120, 729)        # column j = cell*9 + within-group idx

    # --- pad hidden dim 120 -> 128 (zeros; padded lanes stay 0 through the net)
    w1p = jnp.zeros((81, HID), jnp.float32).at[:, :120].set(w1)
    b1p = jnp.zeros((1, HID), jnp.float32).at[:, :120].set(b1)
    w2p = jnp.zeros((HID, HID), jnp.float32).at[:120, :120].set(w2)
    b2p = jnp.zeros((1, HID), jnp.float32).at[:, :120].set(b2)
    w3p = jnp.zeros((HID, HID), jnp.float32).at[:120, :120].set(w3)
    b3p = jnp.zeros((1, HID), jnp.float32).at[:, :120].set(b3)

    # --- fuse + lane-pack the last layer: w4p[k, w*128 + g] = w4[k, g*9 + w]
    w4r = jnp.transpose(w4.reshape(120, 81, NGRP), (2, 0, 1))        # (9, 120, 81)
    w4p = jnp.zeros((NGRP, HID, LANES), jnp.float32).at[:, :120, :81].set(w4r)
    w4p = jnp.transpose(w4p, (1, 0, 2)).reshape(HID, OUT_W)          # (128, 1152)

    b4r = jnp.transpose(b4.reshape(81, NGRP), (1, 0))                # (9, 81)
    b4p = jnp.zeros((NGRP, LANES), jnp.float32).at[:, :81].set(b4r).reshape(1, OUT_W)

    # Matmul weights in bf16 (MXU-native, halves weight DMA); biases stay f32.
    padded = (w1p.astype(jnp.bfloat16), b1p,
              w2p.astype(jnp.bfloat16), b2p,
              w3p.astype(jnp.bfloat16), b3p,
              w4p.astype(jnp.bfloat16), b4p)
    raw = (w1, b1, w2, b2, w3, b3, w4, b4)
    return padded, raw


def reference(x, raw):
    """Plain-JAX f32 reference of the PyTorch forward (sanity check)."""
    w1, b1, w2, b2, w3, b3, w4, b4 = raw
    h = jnp.tanh(x @ w1 + b1)
    h = jnp.maximum(h @ w2 + b2, 0.0)
    h = jnp.maximum(h @ w3 + b3, 0.0)
    logits = (h @ w4 + b4).reshape(x.shape[0] * 81, 9)
    out = jax.nn.softmax(logits, axis=-1)
    return out.reshape(x.shape[0], 81, 9)


if __name__ == "__main__":
    key = jax.random.PRNGKey(0)
    kp, kx = jax.random.split(key)
    params, raw = init_params(kp)

    B = 8
    x = jax.random.uniform(kx, (B, 81), jnp.float32)   # sudoku-board-like input

    out = doku_net(x, params)
    out = jax.block_until_ready(out)

    ref = reference(x, raw)
    assert out.shape == (B, 81, 9)
    # bf16 matmul inputs with f32 accumulation: relax tolerance vs f32 reference.
    assert jnp.allclose(out, ref, atol=3e-3, rtol=3e-2)
    # probabilities in each group of 9 must sum to ~1
    assert jnp.allclose(out.sum(-1), 1.0, atol=1e-3)

    print("KERNEL_OK")
</pallas_src>

<mosaic_0001>
module attributes {stable_mosaic.version = 11 : i64} {
  func.func @doku_kernel(%arg0: i32, %arg1: memref<8x81xf32, #tpu.memory_space<vmem>>, %arg2: memref<81x128xbf16, #tpu.memory_space<vmem>>, %arg3: memref<1x128xf32, #tpu.memory_space<vmem>>, %arg4: memref<128x128xbf16, #tpu.memory_space<vmem>>, %arg5: memref<1x128xf32, #tpu.memory_space<vmem>>, %arg6: memref<128x128xbf16, #tpu.memory_space<vmem>>, %arg7: memref<1x128xf32, #tpu.memory_space<vmem>>, %arg8: memref<128x1152xbf16, #tpu.memory_space<vmem>>, %arg9: memref<1x1152xf32, #tpu.memory_space<vmem>>, %arg10: memref<8x1152xf32, #tpu.memory_space<vmem>>) attributes {dimension_semantics = [#tpu.dimension_semantics<parallel>], iteration_bounds = array<i64: 1>, scalar_prefetch = 0 : i64, scratch_operands = 0 : i64, tpu.core_type = #tpu.core_type<tc>, window_params = [{transform_indices = @transform_0, window_bounds = array<i64: 8, 81>}, {pipeline_mode = #tpu.pipeline_mode<synchronous>, transform_indices = @transform_1, window_bounds = array<i64: 81, 128>}, {pipeline_mode = #tpu.pipeline_mode<synchronous>, transform_indices = @transform_2, window_bounds = array<i64: 1, 128>}, {pipeline_mode = #tpu.pipeline_mode<synchronous>, transform_indices = @transform_3, window_bounds = array<i64: 128, 128>}, {pipeline_mode = #tpu.pipeline_mode<synchronous>, transform_indices = @transform_4, window_bounds = array<i64: 1, 128>}, {pipeline_mode = #tpu.pipeline_mode<synchronous>, transform_indices = @transform_5, window_bounds = array<i64: 128, 128>}, {pipeline_mode = #tpu.pipeline_mode<synchronous>, transform_indices = @transform_6, window_bounds = array<i64: 1, 128>}, {pipeline_mode = #tpu.pipeline_mode<synchronous>, transform_indices = @transform_7, window_bounds = array<i64: 128, 1152>}, {pipeline_mode = #tpu.pipeline_mode<synchronous>, transform_indices = @transform_8, window_bounds = array<i64: 1, 1152>}, {transform_indices = @transform_9, window_bounds = array<i64: 8, 1152>}]} {
    %c0 = arith.constant 0 : index
    %c0_0 = arith.constant 0 : index
    %0 = vector.load %arg1[%c0, %c0_0] : memref<8x81xf32, #tpu.memory_space<vmem>>, vector<8x81xf32>
    %1 = arith.truncf %0 : vector<8x81xf32> to vector<8x81xbf16>
    %c0_1 = arith.constant 0 : index
    %c0_2 = arith.constant 0 : index
    %2 = vector.load %arg2[%c0_1, %c0_2] : memref<81x128xbf16, #tpu.memory_space<vmem>>, vector<81x128xbf16>
    %cst = arith.constant dense<0.000000e+00> : vector<8x128xf32>
    %3 = tpu.matmul %1, %2, %cst {dimension_numbers = #tpu.dot_dimension_numbers<[1], [0], [0], [1], [0, 0, 1, 1], [], []>} : vector<8x81xbf16>, vector<81x128xbf16>, vector<8x128xf32> -> vector<8x128xf32>
    %c0_3 = arith.constant 0 : index
    %c0_4 = arith.constant 0 : index
    %4 = vector.load %arg3[%c0_3, %c0_4] : memref<1x128xf32, #tpu.memory_space<vmem>>, vector<1x128xf32>
    %5 = vector.broadcast %4 : vector<1x128xf32> to vector<8x128xf32>
    %6 = arith.addf %3, %5 : vector<8x128xf32>
    %7 = math.tanh %6 : vector<8x128xf32>
    %8 = arith.truncf %7 : vector<8x128xf32> to vector<8x128xbf16>
    %c0_5 = arith.constant 0 : index
    %c0_6 = arith.constant 0 : index
    %9 = vector.load %arg4[%c0_5, %c0_6] : memref<128x128xbf16, #tpu.memory_space<vmem>>, vector<128x128xbf16>
    %cst_7 = arith.constant dense<0.000000e+00> : vector<8x128xf32>
    %10 = tpu.matmul %8, %9, %cst_7 {dimension_numbers = #tpu.dot_dimension_numbers<[1], [0], [0], [1], [0, 0, 1, 1], [], []>} : vector<8x128xbf16>, vector<128x128xbf16>, vector<8x128xf32> -> vector<8x128xf32>
    %c0_8 = arith.constant 0 : index
    %c0_9 = arith.constant 0 : index
    %11 = vector.load %arg5[%c0_8, %c0_9] : memref<1x128xf32, #tpu.memory_space<vmem>>, vector<1x128xf32>
    %12 = vector.broadcast %11 : vector<1x128xf32> to vector<8x128xf32>
    %13 = arith.addf %10, %12 : vector<8x128xf32>
    %cst_10 = arith.constant 0.000000e+00 : f32
    %14 = vector.broadcast %cst_10 : f32 to vector<8x128xf32>
    %15 = arith.maximumf %13, %14 : vector<8x128xf32>
    %16 = arith.truncf %15 : vector<8x128xf32> to vector<8x128xbf16>
    %c0_11 = arith.constant 0 : index
    %c0_12 = arith.constant 0 : index
    %17 = vector.load %arg6[%c0_11, %c0_12] : memref<128x128xbf16, #tpu.memory_space<vmem>>, vector<128x128xbf16>
    %cst_13 = arith.constant dense<0.000000e+00> : vector<8x128xf32>
    %18 = tpu.matmul %16, %17, %cst_13 {dimension_numbers = #tpu.dot_dimension_numbers<[1], [0], [0], [1], [0, 0, 1, 1], [], []>} : vector<8x128xbf16>, vector<128x128xbf16>, vector<8x128xf32> -> vector<8x128xf32>
    %c0_14 = arith.constant 0 : index
    %c0_15 = arith.constant 0 : index
    %19 = vector.load %arg7[%c0_14, %c0_15] : memref<1x128xf32, #tpu.memory_space<vmem>>, vector<1x128xf32>
    %20 = vector.broadcast %19 : vector<1x128xf32> to vector<8x128xf32>
    %21 = arith.addf %18, %20 : vector<8x128xf32>
    %cst_16 = arith.constant 0.000000e+00 : f32
    %22 = vector.broadcast %cst_16 : f32 to vector<8x128xf32>
    %23 = arith.maximumf %21, %22 : vector<8x128xf32>
    %24 = arith.truncf %23 : vector<8x128xf32> to vector<8x128xbf16>
    %c0_17 = arith.constant 0 : index
    %c0_18 = arith.constant 0 : index
    %25 = vector.load %arg8[%c0_17, %c0_18] : memref<128x1152xbf16, #tpu.memory_space<vmem>>, vector<128x1152xbf16>
    %cst_19 = arith.constant dense<0.000000e+00> : vector<8x1152xf32>
    %26 = tpu.matmul %24, %25, %cst_19 {dimension_numbers = #tpu.dot_dimension_numbers<[1], [0], [0], [1], [0, 0, 1, 1], [], []>} : vector<8x128xbf16>, vector<128x1152xbf16>, vector<8x1152xf32> -> vector<8x1152xf32>
    %c0_20 = arith.constant 0 : index
    %c0_21 = arith.constant 0 : index
    %27 = vector.load %arg9[%c0_20, %c0_21] : memref<1x1152xf32, #tpu.memory_space<vmem>>, vector<1x1152xf32>
    %28 = vector.broadcast %27 : vector<1x1152xf32> to vector<8x1152xf32>
    %29 = arith.addf %26, %28 : vector<8x1152xf32>
    %30 = vector.extract_strided_slice %29 {offsets = [0, 0], sizes = [8, 128], strides = [1, 1]} : vector<8x1152xf32> to vector<8x128xf32>
    %31 = vector.extract_strided_slice %29 {offsets = [0, 128], sizes = [8, 128], strides = [1, 1]} : vector<8x1152xf32> to vector<8x128xf32>
    %32 = arith.maximumf %30, %31 : vector<8x128xf32>
    %33 = vector.extract_strided_slice %29 {offsets = [0, 256], sizes = [8, 128], strides = [1, 1]} : vector<8x1152xf32> to vector<8x128xf32>
    %34 = arith.maximumf %32, %33 : vector<8x128xf32>
    %35 = vector.extract_strided_slice %29 {offsets = [0, 384], sizes = [8, 128], strides = [1, 1]} : vector<8x1152xf32> to vector<8x128xf32>
    %36 = arith.maximumf %34, %35 : vector<8x128xf32>
    %37 = vector.extract_strided_slice %29 {offsets = [0, 512], sizes = [8, 128], strides = [1, 1]} : vector<8x1152xf32> to vector<8x128xf32>
    %38 = arith.maximumf %36, %37 : vector<8x128xf32>
    %39 = vector.extract_strided_slice %29 {offsets = [0, 640], sizes = [8, 128], strides = [1, 1]} : vector<8x1152xf32> to vector<8x128xf32>
    %40 = arith.maximumf %38, %39 : vector<8x128xf32>
    %41 = vector.extract_strided_slice %29 {offsets = [0, 768], sizes = [8, 128], strides = [1, 1]} : vector<8x1152xf32> to vector<8x128xf32>
    %42 = arith.maximumf %40, %41 : vector<8x128xf32>
    %43 = vector.extract_strided_slice %29 {offsets = [0, 896], sizes = [8, 128], strides = [1, 1]} : vector<8x1152xf32> to vector<8x128xf32>
    %44 = arith.maximumf %42, %43 : vector<8x128xf32>
    %45 = vector.extract_strided_slice %29 {offsets = [0, 1024], sizes = [8, 128], strides = [1, 1]} : vector<8x1152xf32> to vector<8x128xf32>
    %46 = arith.maximumf %44, %45 : vector<8x128xf32>
    %cst_22 = arith.constant 0.000000e+00 : f32
    %47 = vector.broadcast %cst_22 : f32 to vector<8x128xf32>
    %48 = vector.extract_strided_slice %29 {offsets = [0, 0], sizes = [8, 128], strides = [1, 1]} : vector<8x1152xf32> to vector<8x128xf32>
    %49 = arith.subf %48, %46 : vector<8x128xf32>
    %50 = math.exp %49 : vector<8x128xf32>
    %c0_23 = arith.constant 0 : index
    %c0_24 = arith.constant 0 : index
    %51 = vector.load %arg10[%c0_23, %c0_24] : memref<8x1152xf32, #tpu.memory_space<vmem>>, vector<8x128xf32>
    tpu.vector_store %arg10[%c0_23, %c0_24], %50 {strides = array<i32>} : memref<8x1152xf32, #tpu.memory_space<vmem>>, vector<8x128xf32>,
    %52 = arith.addf %47, %50 : vector<8x128xf32>
    %53 = vector.extract_strided_slice %29 {offsets = [0, 128], sizes = [8, 128], strides = [1, 1]} : vector<8x1152xf32> to vector<8x128xf32>
    %54 = arith.subf %53, %46 : vector<8x128xf32>
    %55 = math.exp %54 : vector<8x128xf32>
    %c0_25 = arith.constant 0 : index
    %c128 = arith.constant 128 : index
    %56 = vector.load %arg10[%c0_25, %c128] : memref<8x1152xf32, #tpu.memory_space<vmem>>, vector<8x128xf32>
    tpu.vector_store %arg10[%c0_25, %c128], %55 {strides = array<i32>} : memref<8x1152xf32, #tpu.memory_space<vmem>>, vector<8x128xf32>,
    %57 = arith.addf %52, %55 : vector<8x128xf32>
    %58 = vector.extract_strided_slice %29 {offsets = [0, 256], sizes = [8, 128], strides = [1, 1]} : vector<8x1152xf32> to vector<8x128xf32>
    %59 = arith.subf %58, %46 : vector<8x128xf32>
    %60 = math.exp %59 : vector<8x128xf32>
    %c0_26 = arith.constant 0 : index
    %c256 = arith.constant 256 : index
    %61 = vector.load %arg10[%c0_26, %c256] : memref<8x1152xf32, #tpu.memory_space<vmem>>, vector<8x128xf32>
    tpu.vector_store %arg10[%c0_26, %c256], %60 {strides = array<i32>} : memref<8x1152xf32, #tpu.memory_space<vmem>>, vector<8x128xf32>,
    %62 = arith.addf %57, %60 : vector<8x128xf32>
    %63 = vector.extract_strided_slice %29 {offsets = [0, 384], sizes = [8, 128], strides = [1, 1]} : vector<8x1152xf32> to vector<8x128xf32>
    %64 = arith.subf %63, %46 : vector<8x128xf32>
    %65 = math.exp %64 : vector<8x128xf32>
    %c0_27 = arith.constant 0 : index
    %c384 = arith.constant 384 : index
    %66 = vector.load %arg10[%c0_27, %c384] : memref<8x1152xf32, #tpu.memory_space<vmem>>, vector<8x128xf32>
    tpu.vector_store %arg10[%c0_27, %c384], %65 {strides = array<i32>} : memref<8x1152xf32, #tpu.memory_space<vmem>>, vector<8x128xf32>,
    %67 = arith.addf %62, %65 : vector<8x128xf32>
    %68 = vector.extract_strided_slice %29 {offsets = [0, 512], sizes = [8, 128], strides = [1, 1]} : vector<8x1152xf32> to vector<8x128xf32>
    %69 = arith.subf %68, %46 : vector<8x128xf32>
    %70 = math.exp %69 : vector<8x128xf32>
    %c0_28 = arith.constant 0 : index
    %c512 = arith.constant 512 : index
    %71 = vector.load %arg10[%c0_28, %c512] : memref<8x1152xf32, #tpu.memory_space<vmem>>, vector<8x128xf32>
    tpu.vector_store %arg10[%c0_28, %c512], %70 {strides = array<i32>} : memref<8x1152xf32, #tpu.memory_space<vmem>>, vector<8x128xf32>,
    %72 = arith.addf %67, %70 : vector<8x128xf32>
    %73 = vector.extract_strided_slice %29 {offsets = [0, 640], sizes = [8, 128], strides = [1, 1]} : vector<8x1152xf32> to vector<8x128xf32>
    %74 = arith.subf %73, %46 : vector<8x128xf32>
    %75 = math.exp %74 : vector<8x128xf32>
    %c0_29 = arith.constant 0 : index
    %c640 = arith.constant 640 : index
    %76 = vector.load %arg10[%c0_29, %c640] : memref<8x1152xf32, #tpu.memory_space<vmem>>, vector<8x128xf32>
    tpu.vector_store %arg10[%c0_29, %c640], %75 {strides = array<i32>} : memref<8x1152xf32, #tpu.memory_space<vmem>>, vector<8x128xf32>,
    %77 = arith.addf %72, %75 : vector<8x128xf32>
    %78 = vector.extract_strided_slice %29 {offsets = [0, 768], sizes = [8, 128], strides = [1, 1]} : vector<8x1152xf32> to vector<8x128xf32>
    %79 = arith.subf %78, %46 : vector<8x128xf32>
    %80 = math.exp %79 : vector<8x128xf32>
    %c0_30 = arith.constant 0 : index
    %c768 = arith.constant 768 : index
    %81 = vector.load %arg10[%c0_30, %c768] : memref<8x1152xf32, #tpu.memory_space<vmem>>, vector<8x128xf32>
    tpu.vector_store %arg10[%c0_30, %c768], %80 {strides = array<i32>} : memref<8x1152xf32, #tpu.memory_space<vmem>>, vector<8x128xf32>,
    %82 = arith.addf %77, %80 : vector<8x128xf32>
    %83 = vector.extract_strided_slice %29 {offsets = [0, 896], sizes = [8, 128], strides = [1, 1]} : vector<8x1152xf32> to vector<8x128xf32>
    %84 = arith.subf %83, %46 : vector<8x128xf32>
    %85 = math.exp %84 : vector<8x128xf32>
    %c0_31 = arith.constant 0 : index
    %c896 = arith.constant 896 : index
    %86 = vector.load %arg10[%c0_31, %c896] : memref<8x1152xf32, #tpu.memory_space<vmem>>, vector<8x128xf32>
    tpu.vector_store %arg10[%c0_31, %c896], %85 {strides = array<i32>} : memref<8x1152xf32, #tpu.memory_space<vmem>>, vector<8x128xf32>,
    %87 = arith.addf %82, %85 : vector<8x128xf32>
    %88 = vector.extract_strided_slice %29 {offsets = [0, 1024], sizes = [8, 128], strides = [1, 1]} : vector<8x1152xf32> to vector<8x128xf32>
    %89 = arith.subf %88, %46 : vector<8x128xf32>
    %90 = math.exp %89 : vector<8x128xf32>
    %c0_32 = arith.constant 0 : index
    %c1024 = arith.constant 1024 : index
    %91 = vector.load %arg10[%c0_32, %c1024] : memref<8x1152xf32, #tpu.memory_space<vmem>>, vector<8x128xf32>
    tpu.vector_store %arg10[%c0_32, %c1024], %90 {strides = array<i32>} : memref<8x1152xf32, #tpu.memory_space<vmem>>, vector<8x128xf32>,
    %92 = arith.addf %87, %90 : vector<8x128xf32>
    %93 = tpu.reciprocal %92 {approx = true} : vector<8x128xf32> -> vector<8x128xf32>
    %94 = arith.mulf %92, %93 : vector<8x128xf32>
    %cst_33 = arith.constant 2.000000e+00 : f32
    %95 = vector.broadcast %cst_33 : f32 to vector<8x128xf32>
    %96 = arith.subf %95, %94 : vector<8x128xf32>
    %97 = arith.mulf %93, %96 : vector<8x128xf32>
    %c0_34 = arith.constant 0 : index
    %c0_35 = arith.constant 0 : index
    %98 = vector.load %arg10[%c0_34, %c0_35] : memref<8x1152xf32, #tpu.memory_space<vmem>>, vector<8x128xf32>
    %99 = arith.mulf %98, %97 : vector<8x128xf32>
    %c0_36 = arith.constant 0 : index
    %c0_37 = arith.constant 0 : index
    %100 = vector.load %arg10[%c0_36, %c0_37] : memref<8x1152xf32, #tpu.memory_space<vmem>>, vector<8x128xf32>
    tpu.vector_store %arg10[%c0_36, %c0_37], %99 {strides = array<i32>} : memref<8x1152xf32, #tpu.memory_space<vmem>>, vector<8x128xf32>,
    %c0_38 = arith.constant 0 : index
    %c128_39 = arith.constant 128 : index
    %101 = vector.load %arg10[%c0_38, %c128_39] : memref<8x1152xf32, #tpu.memory_space<vmem>>, vector<8x128xf32>
    %102 = arith.mulf %101, %97 : vector<8x128xf32>
    %c0_40 = arith.constant 0 : index
    %c128_41 = arith.constant 128 : index
    %103 = vector.load %arg10[%c0_40, %c128_41] : memref<8x1152xf32, #tpu.memory_space<vmem>>, vector<8x128xf32>
    tpu.vector_store %arg10[%c0_40, %c128_41], %102 {strides = array<i32>} : memref<8x1152xf32, #tpu.memory_space<vmem>>, vector<8x128xf32>,
    %c0_42 = arith.constant 0 : index
    %c256_43 = arith.constant 256 : index
    %104 = vector.load %arg10[%c0_42, %c256_43] : memref<8x1152xf32, #tpu.memory_space<vmem>>, vector<8x128xf32>
    %105 = arith.mulf %104, %97 : vector<8x128xf32>
    %c0_44 = arith.constant 0 : index
    %c256_45 = arith.constant 256 : index
    %106 = vector.load %arg10[%c0_44, %c256_45] : memref<8x1152xf32, #tpu.memory_space<vmem>>, vector<8x128xf32>
    tpu.vector_store %arg10[%c0_44, %c256_45], %105 {strides = array<i32>} : memref<8x1152xf32, #tpu.memory_space<vmem>>, vector<8x128xf32>,
    %c0_46 = arith.constant 0 : index
    %c384_47 = arith.constant 384 : index
    %107 = vector.load %arg10[%c0_46, %c384_47] : memref<8x1152xf32, #tpu.memory_space<vmem>>, vector<8x128xf32>
    %108 = arith.mulf %107, %97 : vector<8x128xf32>
    %c0_48 = arith.constant 0 : index
    %c384_49 = arith.constant 384 : index
    %109 = vector.load %arg10[%c0_48, %c384_49] : memref<8x1152xf32, #tpu.memory_space<vmem>>, vector<8x128xf32>
    tpu.vector_store %arg10[%c0_48, %c384_49], %108 {strides = array<i32>} : memref<8x1152xf32, #tpu.memory_space<vmem>>, vector<8x128xf32>,
    %c0_50 = arith.constant 0 : index
    %c512_51 = arith.constant 512 : index
    %110 = vector.load %arg10[%c0_50, %c512_51] : memref<8x1152xf32, #tpu.memory_space<vmem>>, vector<8x128xf32>
    %111 = arith.mulf %110, %97 : vector<8x128xf32>
    %c0_52 = arith.constant 0 : index
    %c512_53 = arith.constant 512 : index
    %112 = vector.load %arg10[%c0_52, %c512_53] : memref<8x1152xf32, #tpu.memory_space<vmem>>, vector<8x128xf32>
    tpu.vector_store %arg10[%c0_52, %c512_53], %111 {strides = array<i32>} : memref<8x1152xf32, #tpu.memory_space<vmem>>, vector<8x128xf32>,
    %c0_54 = arith.constant 0 : index
    %c640_55 = arith.constant 640 : index
    %113 = vector.load %arg10[%c0_54, %c640_55] : memref<8x1152xf32, #tpu.memory_space<vmem>>, vector<8x128xf32>
    %114 = arith.mulf %113, %97 : vector<8x128xf32>
    %c0_56 = arith.constant 0 : index
    %c640_57 = arith.constant 640 : index
    %115 = vector.load %arg10[%c0_56, %c640_57] : memref<8x1152xf32, #tpu.memory_space<vmem>>, vector<8x128xf32>
    tpu.vector_store %arg10[%c0_56, %c640_57], %114 {strides = array<i32>} : memref<8x1152xf32, #tpu.memory_space<vmem>>, vector<8x128xf32>,
    %c0_58 = arith.constant 0 : index
    %c768_59 = arith.constant 768 : index
    %116 = vector.load %arg10[%c0_58, %c768_59] : memref<8x1152xf32, #tpu.memory_space<vmem>>, vector<8x128xf32>
    %117 = arith.mulf %116, %97 : vector<8x128xf32>
    %c0_60 = arith.constant 0 : index
    %c768_61 = arith.constant 768 : index
    %118 = vector.load %arg10[%c0_60, %c768_61] : memref<8x1152xf32, #tpu.memory_space<vmem>>, vector<8x128xf32>
    tpu.vector_store %arg10[%c0_60, %c768_61], %117 {strides = array<i32>} : memref<8x1152xf32, #tpu.memory_space<vmem>>, vector<8x128xf32>,
    %c0_62 = arith.constant 0 : index
    %c896_63 = arith.constant 896 : index
    %119 = vector.load %arg10[%c0_62, %c896_63] : memref<8x1152xf32, #tpu.memory_space<vmem>>, vector<8x128xf32>
    %120 = arith.mulf %119, %97 : vector<8x128xf32>
    %c0_64 = arith.constant 0 : index
    %c896_65 = arith.constant 896 : index
    %121 = vector.load %arg10[%c0_64, %c896_65] : memref<8x1152xf32, #tpu.memory_space<vmem>>, vector<8x128xf32>
    tpu.vector_store %arg10[%c0_64, %c896_65], %120 {strides = array<i32>} : memref<8x1152xf32, #tpu.memory_space<vmem>>, vector<8x128xf32>,
    %c0_66 = arith.constant 0 : index
    %c1024_67 = arith.constant 1024 : index
    %122 = vector.load %arg10[%c0_66, %c1024_67] : memref<8x1152xf32, #tpu.memory_space<vmem>>, vector<8x128xf32>
    %123 = arith.mulf %122, %97 : vector<8x128xf32>
    %c0_68 = arith.constant 0 : index
    %c1024_69 = arith.constant 1024 : index
    %124 = vector.load %arg10[%c0_68, %c1024_69] : memref<8x1152xf32, #tpu.memory_space<vmem>>, vector<8x128xf32>
    tpu.vector_store %arg10[%c0_68, %c1024_69], %123 {strides = array<i32>} : memref<8x1152xf32, #tpu.memory_space<vmem>>, vector<8x128xf32>,
    return
  }
  func.func @transform_0(%arg0: i32) -> (i32, i32) {
    %c0_i32 = arith.constant 0 : i32
    %c0_i32_0 = arith.constant 0 : i32
    return %arg0, %c0_i32 : i32, i32
  }
  func.func @transform_1(%arg0: i32) -> (i32, i32) {
    %c0_i32 = arith.constant 0 : i32
    %c0_i32_0 = arith.constant 0 : i32
    %c0_i32_1 = arith.constant 0 : i32
    return %c0_i32, %c0_i32_0 : i32, i32
  }
  func.func @transform_2(%arg0: i32) -> (i32, i32) {
    %c0_i32 = arith.constant 0 : i32
    %c0_i32_0 = arith.constant 0 : i32
    %c0_i32_1 = arith.constant 0 : i32
    return %c0_i32, %c0_i32_0 : i32, i32
  }
  func.func @transform_3(%arg0: i32) -> (i32, i32) {
    %c0_i32 = arith.constant 0 : i32
    %c0_i32_0 = arith.constant 0 : i32
    %c0_i32_1 = arith.constant 0 : i32
    return %c0_i32, %c0_i32_0 : i32, i32
  }
  func.func @transform_4(%arg0: i32) -> (i32, i32) {
    %c0_i32 = arith.constant 0 : i32
    %c0_i32_0 = arith.constant 0 : i32
    %c0_i32_1 = arith.constant 0 : i32
    return %c0_i32, %c0_i32_0 : i32, i32
  }
  func.func @transform_5(%arg0: i32) -> (i32, i32) {
    %c0_i32 = arith.constant 0 : i32
    %c0_i32_0 = arith.constant 0 : i32
    %c0_i32_1 = arith.constant 0 : i32
    return %c0_i32, %c0_i32_0 : i32, i32
  }
  func.func @transform_6(%arg0: i32) -> (i32, i32) {
    %c0_i32 = arith.constant 0 : i32
    %c0_i32_0 = arith.constant 0 : i32
    %c0_i32_1 = arith.constant 0 : i32
    return %c0_i32, %c0_i32_0 : i32, i32
  }
  func.func @transform_7(%arg0: i32) -> (i32, i32) {
    %c0_i32 = arith.constant 0 : i32
    %c0_i32_0 = arith.constant 0 : i32
    %c0_i32_1 = arith.constant 0 : i32
    return %c0_i32, %c0_i32_0 : i32, i32
  }
  func.func @transform_8(%arg0: i32) -> (i32, i32) {
    %c0_i32 = arith.constant 0 : i32
    %c0_i32_0 = arith.constant 0 : i32
    %c0_i32_1 = arith.constant 0 : i32
    return %c0_i32, %c0_i32_0 : i32, i32
  }
  func.func @transform_9(%arg0: i32) -> (i32, i32) {
    %c0_i32 = arith.constant 0 : i32
    %c0_i32_0 = arith.constant 0 : i32
    return %arg0, %c0_i32 : i32, i32
  }
}

</mosaic_0001>

<llo_original>
// kernel: tpu_custom_call.1
$region0: #{tpu_custom_call.1}
  #allocation0 [shape = 'u32[]', space=smem, size = 0x4, offset = 0x4, fixed_abs, tag = 'smem constant byte address 0x4 - core index']
  #allocation1 [shape = 'u32[144,128]{1,0:T(1,128)}', space=vmem, size = 0x12000, scoped, tag = 'internal scratch']
  %s0 = inlined_call_operand.hbm [shape: f32[8,81], index: 0, kind: input, shape index: {}]
  %s1 = inlined_call_operand.hbm [shape: bf16[81,128], index: 1, kind: input, shape index: {}]
  %s2 = inlined_call_operand.vmem [shape: f32[1,128], index: 2, kind: input, shape index: {}]
  %s3 = inlined_call_operand.hbm [shape: bf16[128,128], index: 3, kind: input, shape index: {}]
  %s4 = inlined_call_operand.vmem [shape: f32[1,128], index: 4, kind: input, shape index: {}]
  %s5 = inlined_call_operand.hbm [shape: bf16[128,128], index: 5, kind: input, shape index: {}]
  %s6 = inlined_call_operand.vmem [shape: f32[1,128], index: 6, kind: input, shape index: {}]
  %s7 = inlined_call_operand.hbm [shape: bf16[128,1152], index: 7, kind: input, shape index: {}]
  %s8 = inlined_call_operand.vmem [shape: f32[1,1152], index: 8, kind: input, shape index: {}]
  %s9 = inlined_call_operand.hbm [shape: f32[8,1152], index: 9, kind: output, shape index: {}]
  %s10 = sld [smem:[#allocation0]]
  $region66: #{tpu_custom_call.1} parent=0
    _
  %s12 = ssub.s32 1, %s10
  %s13 = scalar_select 0, %s12, %s10
  $region1: #{tpu_custom_call.1} parent=0
    #allocation2 [shape = 'u8[4096]{0}', space=vmem, size = 0x1000, scoped, tag = 'input window, operand 0, single buffered']
    #allocation3 [shape = 's32[1]{0}', space=sflag, size = 0x4, scoped, tag = 'scoped memory for tpu_custom_call.1']
    #allocation4 [shape = 's32[1]{0}', space=sflag, size = 0x4, scoped, tag = 'scoped memory for tpu_custom_call.1']
    #allocation5 [shape = 'u8[22528]{0}', space=vmem, size = 0x5800, scoped, tag = 'input window, operand 1, single buffered']
    #allocation6 [shape = 's32[1]{0}', space=sflag, size = 0x4, scoped, tag = 'scoped memory for tpu_custom_call.1']
    #allocation7 [shape = 'u8[32768]{0}', space=vmem, size = 0x8000, scoped, tag = 'input window, operand 3, single buffered']
    #allocation8 [shape = 'u8[32768]{0}', space=vmem, size = 0x8000, scoped, tag = 'input window, operand 5, single buffered']
    #allocation9 [shape = 's32[1]{0}', space=sflag, size = 0x4, scoped, tag = 'scoped memory for tpu_custom_call.1']
    #allocation10 [shape = 'u8[294912]{0}', space=vmem, size = 0x48000, scoped, tag = 'input window, operand 7, single buffered']
    #allocation11 [shape = 'u8[36864]{0}', space=vmem, size = 0x9000, scoped, tag = 'output window, operand 0, single buffered']
    %14 = vsyncpa [#allocation3], 0
    %15 = vsyncpa [#allocation6], 0
    %16 = vsyncpa [#allocation9], 0
    %17 = vsyncpa [#allocation4], 0
    // Predicated region
    $region2: #{tpu_custom_call.1} parent=1 // pred_check
      _
    $region3: #{tpu_custom_call.1} parent=1 // pred_check_branch
      %19 = sbr.rel (0) target = $region5
    $region4: #{tpu_custom_call.1} parent=1 // pred_region
      %s21 = ssub.s32 128, 128
      %22 = vsyncadd [#allocation3], %s21
      %s24 = sshll.u32 [#allocation2], 4
      %s25 = int_to_ptr.vmem [resolvable:$true] %s24
      %27 = dma.hbm_to_vmem [thread:$0]  %s0, 128, %s25, [#allocation3]
    $region5: #{tpu_custom_call.1} parent=1 // pred_fallthru
      _
    // Predicated region
    $region6: #{tpu_custom_call.1} parent=1 // pred_check
      _
    $region7: #{tpu_custom_call.1} parent=1 // pred_check_branch
      %29 = sbr.rel (0) target = $region9
    $region8: #{tpu_custom_call.1} parent=1 // pred_region
      %s31 = ssub.s32 704, 704
      %32 = vsyncadd [#allocation6], %s31
      %s33 = sshll.u32 [#allocation5], 4
      %s34 = int_to_ptr.vmem [resolvable:$true] %s33
      %39 = dma.hbm_to_vmem [thread:$0]  %s1, 704, %s34, [#allocation6], 64, 64, 4
    $region9: #{tpu_custom_call.1} parent=1 // pred_fallthru
      _
    // Predicated region
    $region10: #{tpu_custom_call.1} parent=1 // pred_check
      _
    $region11: #{tpu_custom_call.1} parent=1 // pred_check_branch
      %41 = sbr.rel (0) target = $region13
    $region12: #{tpu_custom_call.1} parent=1 // pred_region
      _
    $region13: #{tpu_custom_call.1} parent=1 // pred_fallthru
      _
    // Predicated region
    $region14: #{tpu_custom_call.1} parent=1 // pred_check
      _
    $region15: #{tpu_custom_call.1} parent=1 // pred_check_branch
      %43 = sbr.rel (0) target = $region17
    $region16: #{tpu_custom_call.1} parent=1 // pred_region
      %s45 = ssub.s32 1024, 1024
      %46 = vsyncadd [#allocation6], %s45
      %s47 = sshll.u32 [#allocation7], 4
      %s48 = int_to_ptr.vmem [resolvable:$true] %s47
      %53 = dma.hbm_to_vmem [thread:$0]  %s3, 1024, %s48, [#allocation6], 64, 64, 4
    $region17: #{tpu_custom_call.1} parent=1 // pred_fallthru
      _
    // Predicated region
    $region18: #{tpu_custom_call.1} parent=1 // pred_check
      _
    $region19: #{tpu_custom_call.1} parent=1 // pred_check_branch
      %55 = sbr.rel (0) target = $region21
    $region20: #{tpu_custom_call.1} parent=1 // pred_region
      _
    $region21: #{tpu_custom_call.1} parent=1 // pred_fallthru
      _
    // Predicated region
    $region22: #{tpu_custom_call.1} parent=1 // pred_check
      _
    $region23: #{tpu_custom_call.1} parent=1 // pred_check_branch
      %57 = sbr.rel (0) target = $region25
    $region24: #{tpu_custom_call.1} parent=1 // pred_region
      %s59 = ssub.s32 1024, 1024
      %60 = vsyncadd [#allocation9], %s59
      %s61 = sshll.u32 [#allocation8], 4
      %s62 = int_to_ptr.vmem [resolvable:$true] %s61
      %67 = dma.hbm_to_vmem [thread:$0]  %s5, 1024, %s62, [#allocation9], 64, 64, 4
    $region25: #{tpu_custom_call.1} parent=1 // pred_fallthru
      _
    // Predicated region
    $region26: #{tpu_custom_call.1} parent=1 // pred_check
      _
    $region27: #{tpu_custom_call.1} parent=1 // pred_check_branch
      %69 = sbr.rel (0) target = $region29
    $region28: #{tpu_custom_call.1} parent=1 // pred_region
      _
    $region29: #{tpu_custom_call.1} parent=1 // pred_fallthru
      _
    // Predicated region
    $region30: #{tpu_custom_call.1} parent=1 // pred_check
      _
    $region31: #{tpu_custom_call.1} parent=1 // pred_check_branch
      %71 = sbr.rel (0) target = $region33
    $region32: #{tpu_custom_call.1} parent=1 // pred_region
      %s73 = ssub.s32 9216, 9216
      %74 = vsyncadd [#allocation9], %s73
      %s75 = sshll.u32 [#allocation10], 4
      %s76 = int_to_ptr.vmem [resolvable:$true] %s75
      %81 = dma.hbm_to_vmem [thread:$0]  %s7, 9216, %s76, [#allocation9], 576, 576, 36
    $region33: #{tpu_custom_call.1} parent=1 // pred_fallthru
      _
    // Predicated region
    $region34: #{tpu_custom_call.1} parent=1 // pred_check
      _
    $region35: #{tpu_custom_call.1} parent=1 // pred_check_branch
      %83 = sbr.rel (0) target = $region37
    $region36: #{tpu_custom_call.1} parent=1 // pred_region
      _
    $region37: #{tpu_custom_call.1} parent=1 // pred_fallthru
      _
    // Predicated region
    $region38: #{tpu_custom_call.1} parent=1 // pred_check
      _
    $region39: #{tpu_custom_call.1} parent=1 // pred_check_branch
      %85 = sbr.rel (0) target = $region41
    $region40: #{tpu_custom_call.1} parent=1 // pred_region
      %86 = dma.done [#allocation3], 128
    $region41: #{tpu_custom_call.1} parent=1 // pred_fallthru
      _
    // Predicated region
    $region42: #{tpu_custom_call.1} parent=1 // pred_check
      _
    $region43: #{tpu_custom_call.1} parent=1 // pred_check_branch
      %88 = sbr.rel (0) target = $region45
    $region44: #{tpu_custom_call.1} parent=1 // pred_region
      %89 = dma.done [#allocation6], 704
    $region45: #{tpu_custom_call.1} parent=1 // pred_fallthru
      _
    // Predicated region
    $region46: #{tpu_custom_call.1} parent=1 // pred_check
      _
    $region47: #{tpu_custom_call.1} parent=1 // pred_check_branch
      %91 = sbr.rel (0) target = $region49
    $region48: #{tpu_custom_call.1} parent=1 // pred_region
      %92 = dma.done [#allocation6], 1024
    $region49: #{tpu_custom_call.1} parent=1 // pred_fallthru
      _
    // Predicated region
    $region50: #{tpu_custom_call.1} parent=1 // pred_check
      _
    $region51: #{tpu_custom_call.1} parent=1 // pred_check_branch
      %94 = sbr.rel (0) target = $region53
    $region52: #{tpu_custom_call.1} parent=1 // pred_region
      %95 = dma.done [#allocation9], 1024
    $region53: #{tpu_custom_call.1} parent=1 // pred_fallthru
      _
    // Predicated region
    $region54: #{tpu_custom_call.1} parent=1 // pred_check
      _
    $region55: #{tpu_custom_call.1} parent=1 // pred_check_branch
      %97 = sbr.rel (0) target = $region57
    $region56: #{tpu_custom_call.1} parent=1 // pred_region
      %98 = dma.done [#allocation9], 9216
    $region57: #{tpu_custom_call.1} parent=1 // pred_fallthru
      _
    %v100 = vld [vmem:[#allocation2] sm:$0xff]
    %v101 = vpack.c.bf16 %v100, %v100
    %v102 = vld [vmem:[#allocation5] sm:$0xf]
    %v103 = vld [vmem:[#allocation5 + $0x4] sm:$0xf]
    %v104 = vld [vmem:[#allocation5 + $0x8] sm:$0xf]
    %v105 = vld [vmem:[#allocation5 + $0xc] sm:$0xf]
    %v106 = vld [vmem:[#allocation5 + $0x10] sm:$0xf]
    %v107 = vld [vmem:[#allocation5 + $0x14] sm:$0xf]
    %v108 = vld [vmem:[#allocation5 + $0x18] sm:$0xf]
    %v109 = vld [vmem:[#allocation5 + $0x1c] sm:$0xf]
    %v110 = vld [vmem:[#allocation5 + $0x20] sm:$0xf]
    %v111 = vld [vmem:[#allocation5 + $0x24] sm:$0xf]
    %v112 = vld [vmem:[#allocation5 + $0x28] sm:$0x1]
    %v113 = vld [vmem:[%s2] sm:$0x1]
    %v115 = vlaneseq
    %v116 = vshrl.u32 %v115, 7
    %v117 = vsub.s32 0, %v116
    %v118 = vrot.slane %v113, %v117
    %v131 = vunpack.c.l.b16 %v102
    %v132 = vunpack.c.l.b16 %v103
    %v133 = vunpack.c.l.b16 %v104
    %v134 = vunpack.c.l.b16 %v105
    %v135 = vunpack.c.l.b16 %v106
    %v136 = vunpack.c.l.b16 %v107
    %v137 = vunpack.c.l.b16 %v108
    %v138 = vunpack.c.l.b16 %v109
    %v139 = vunpack.c.l.b16 %v110
    %v140 = vunpack.c.l.b16 %v111
    %v141 = vunpack.c.l.b16 %v112
    %v142 = vpack.c.b16 %v132, %v131
    %v143 = vpack.c.b16 %v134, %v133
    %v144 = vpack.c.b16 %v136, %v135
    %v145 = vpack.c.b16 %v138, %v137
    %v146 = vpack.c.b16 %v140, %v139
    %v147 = vpack.c.b16 %v141, %v141
    %vm153 = vcmask 662528
    %v155 = vsel %vm153, %v101, 0
    %vm157 = vcmask 1040384
    %v158 = vsel 0, 4294967295, 65535
    %v159 = vsel %vm157, %v158, 0
    %v161 = vand.u32 %v147, %v159
    %163 = vmatprep.subr.bf16.mxu0 0
    %164 = vmatpush1.bf16.msra.mxu0 %v142
    %165 = vmatprep.subr.bf16.mxu0 0
    %166 = vmatpush1.bf16.msra.mxu0 %v143
    %167 = vmatprep.subr.bf16.mxu0 0
    %168 = vmatpush1.bf16.msra.mxu0 %v144
    %169 = vmatprep.subr.bf16.mxu0 0
    %170 = vmatpush1.bf16.msra.mxu0 %v145
    %171 = vmatprep.subr.bf16.mxu0 0
    %172 = vmatpush1.bf16.msra.mxu0 %v146
    %173 = vmatprep.subr.bf16.mxu0 0
    %174 = vmatpush1.bf16.msra.mxu0 %v161
    %175 = vmatprep.subr.bf16.mxu0 0
    %176 = vmatpush1.bf16.msra.mxu0 0
    %177 = vmatprep.subr.bf16.mxu0 0
    %178 = vmatpush1.bf16.msra.mxu0 0
    %179 = vmatprep.subr.bf16.mxu0 0
    %180 = vmatpush1.bf16.msra.mxu0 0
    %181 = vmatprep.subr.bf16.mxu0 0
    %182 = vmatpush1.bf16.msra.mxu0 0
    %183 = vmatprep.subr.bf16.mxu0 0
    %184 = vmatpush1.bf16.msra.mxu0 0
    %185 = vmatprep.subr.bf16.mxu0 0
    %186 = vmatpush1.bf16.msra.mxu0 0
    %187 = vmatprep.subr.bf16.mxu0 0
    %188 = vmatpush1.bf16.msra.mxu0 0
    %189 = vmatprep.subr.bf16.mxu0 0
    %190 = vmatpush1.bf16.msra.mxu0 0
    %191 = vmatprep.subr.bf16.mxu0 0
    %192 = vmatpush1.bf16.msra.mxu0 0
    %193 = vmatprep.subr.bf16.mxu0 0
    %194 = vmatpush1.bf16.msra.mxu0 0
    %195 = vmatprep.mubr.bf16.mxu0 0
    %196 = vmatmul.mubr.bf16.gmra.mrb[0].mxu0 %v155
    %v197 = vpop.f32.mrb[0].mxu0
    %v198 = vadd.f32 %v118, %v197
    %v199 = vpop.f32.mrb[0].mxu0
    %v200 = vpop.f32.mrb[0].mxu0
    %v201 = vpop.f32.mrb[0].mxu0
    %202 = vdwg.mxu0
    %v203 = vtanh.pop %v198
    %v204 = vpack.c.bf16 %v203, %v203
    %v205 = vld [vmem:[#allocation7] sm:$0xf]
    %v206 = vld [vmem:[#allocation7 + $0x4] sm:$0xf]
    %v207 = vld [vmem:[#allocation7 + $0x8] sm:$0xf]
    %v208 = vld [vmem:[#allocation7 + $0xc] sm:$0xf]
    %v209 = vld [vmem:[#allocation7 + $0x10] sm:$0xf]
    %v210 = vld [vmem:[#allocation7 + $0x14] sm:$0xf]
    %v211 = vld [vmem:[#allocation7 + $0x18] sm:$0xf]
    %v212 = vld [vmem:[#allocation7 + $0x1c] sm:$0xf]
    %v213 = vld [vmem:[#allocation7 + $0x20] sm:$0xf]
    %v214 = vld [vmem:[#allocation7 + $0x24] sm:$0xf]
    %v215 = vld [vmem:[#allocation7 + $0x28] sm:$0xf]
    %v216 = vld [vmem:[#allocation7 + $0x2c] sm:$0xf]
    %v217 = vld [vmem:[#allocation7 + $0x30] sm:$0xf]
    %v218 = vld [vmem:[#allocation7 + $0x34] sm:$0xf]
    %v219 = vld [vmem:[#allocation7 + $0x38] sm:$0xf]
    %v220 = vld [vmem:[#allocation7 + $0x3c] sm:$0xf]
    %v221 = vld [vmem:[%s4] sm:$0x1]
    %v223 = vlaneseq
    %v224 = vshrl.u32 %v223, 7
    %v225 = vsub.s32 0, %v224
    %v226 = vrot.slane %v221, %v225
    %v244 = vunpack.c.l.b16 %v205
    %v245 = vunpack.c.l.b16 %v206
    %v246 = vunpack.c.l.b16 %v207
    %v247 = vunpack.c.l.b16 %v208
    %v248 = vunpack.c.l.b16 %v209
    %v249 = vunpack.c.l.b16 %v210
    %v250 = vunpack.c.l.b16 %v211
    %v251 = vunpack.c.l.b16 %v212
    %v252 = vunpack.c.l.b16 %v213
    %v253 = vunpack.c.l.b16 %v214
    %v254 = vunpack.c.l.b16 %v215
    %v255 = vunpack.c.l.b16 %v216
    %v256 = vunpack.c.l.b16 %v217
    %v257 = vunpack.c.l.b16 %v218
    %v258 = vunpack.c.l.b16 %v219
    %v259 = vunpack.c.l.b16 %v220
    %v260 = vpack.c.b16 %v245, %v244
    %v261 = vpack.c.b16 %v247, %v246
    %v262 = vpack.c.b16 %v249, %v248
    %v263 = vpack.c.b16 %v251, %v250
    %v264 = vpack.c.b16 %v253, %v252
    %v265 = vpack.c.b16 %v255, %v254
    %v266 = vpack.c.b16 %v257, %v256
    %v267 = vpack.c.b16 %v259, %v258
    %276 = vmatprep.subr.bf16.mxu0 0
    %277 = vmatpush1.bf16.msra.mxu0 %v260
    %278 = vmatprep.subr.bf16.mxu0 0
    %279 = vmatpush1.bf16.msra.mxu0 %v261
    %280 = vmatprep.subr.bf16.mxu0 0
    %281 = vmatpush1.bf16.msra.mxu0 %v262
    %282 = vmatprep.subr.bf16.mxu0 0
    %283 = vmatpush1.bf16.msra.mxu0 %v263
    %284 = vmatprep.subr.bf16.mxu0 0
    %285 = vmatpush1.bf16.msra.mxu0 %v264
    %286 = vmatprep.subr.bf16.mxu0 0
    %287 = vmatpush1.bf16.msra.mxu0 %v265
    %288 = vmatprep.subr.bf16.mxu0 0
    %289 = vmatpush1.bf16.msra.mxu0 %v266
    %290 = vmatprep.subr.bf16.mxu0 0
    %291 = vmatpush1.bf16.msra.mxu0 %v267
    %292 = vmatprep.subr.bf16.mxu0 0
    %293 = vmatpush1.bf16.msra.mxu0 0
    %294 = vmatprep.subr.bf16.mxu0 0
    %295 = vmatpush1.bf16.msra.mxu0 0
    %296 = vmatprep.subr.bf16.mxu0 0
    %297 = vmatpush1.bf16.msra.mxu0 0
    %298 = vmatprep.subr.bf16.mxu0 0
    %299 = vmatpush1.bf16.msra.mxu0 0
    %300 = vmatprep.subr.bf16.mxu0 0
    %301 = vmatpush1.bf16.msra.mxu0 0
    %302 = vmatprep.subr.bf16.mxu0 0
    %303 = vmatpush1.bf16.msra.mxu0 0
    %304 = vmatprep.subr.bf16.mxu0 0
    %305 = vmatpush1.bf16.msra.mxu0 0
    %306 = vmatprep.subr.bf16.mxu0 0
    %307 = vmatpush1.bf16.msra.mxu0 0
    %308 = vmatprep.mubr.bf16.mxu0 0
    %309 = vmatmul.mubr.bf16.gmra.mrb[0].mxu0 %v204
    %v310 = vpop.f32.mrb[0].mxu0
    %v311 = vadd.f32 %v226, %v310
    %v312 = vpop.f32.mrb[0].mxu0
    %v313 = vpop.f32.mrb[0].mxu0
    %v314 = vpop.f32.mrb[0].mxu0
    %315 = vdwg.mxu0
    %v316 = vmax.f32 %v311, 0.0
    %v317 = vpack.c.bf16 %v316, %v316
    %v318 = vld [vmem:[#allocation8] sm:$0xf]
    %v319 = vld [vmem:[#allocation8 + $0x4] sm:$0xf]
    %v320 = vld [vmem:[#allocation8 + $0x8] sm:$0xf]
    %v321 = vld [vmem:[#allocation8 + $0xc] sm:$0xf]
    %v322 = vld [vmem:[#allocation8 + $0x10] sm:$0xf]
    %v323 = vld [vmem:[#allocation8 + $0x14] sm:$0xf]
    %v324 = vld [vmem:[#allocation8 + $0x18] sm:$0xf]
    %v325 = vld [vmem:[#allocation8 + $0x1c] sm:$0xf]
    %v326 = vld [vmem:[#allocation8 + $0x20] sm:$0xf]
    %v327 = vld [vmem:[#allocation8 + $0x24] sm:$0xf]
    %v328 = vld [vmem:[#allocation8 + $0x28] sm:$0xf]
    %v329 = vld [vmem:[#allocation8 + $0x2c] sm:$0xf]
    %v330 = vld [vmem:[#allocation8 + $0x30] sm:$0xf]
    %v331 = vld [vmem:[#allocation8 + $0x34] sm:$0xf]
    %v332 = vld [vmem:[#allocation8 + $0x38] sm:$0xf]
    %v333 = vld [vmem:[#allocation8 + $0x3c] sm:$0xf]
    %v334 = vld [vmem:[%s6] sm:$0x1]
    %v336 = vlaneseq
    %v337 = vshrl.u32 %v336, 7
    %v338 = vsub.s32 0, %v337
    %v339 = vrot.slane %v334, %v338
    %v357 = vunpack.c.l.b16 %v318
    %v358 = vunpack.c.l.b16 %v319
    %v359 = vunpack.c.l.b16 %v320
    %v360 = vunpack.c.l.b16 %v321
    %v361 = vunpack.c.l.b16 %v322
    %v362 = vunpack.c.l.b16 %v323
    %v363 = vunpack.c.l.b16 %v324
    %v364 = vunpack.c.l.b16 %v325
    %v365 = vunpack.c.l.b16 %v326
    %v366 = vunpack.c.l.b16 %v327
    %v367 = vunpack.c.l.b16 %v328
    %v368 = vunpack.c.l.b16 %v329
    %v369 = vunpack.c.l.b16 %v330
    %v370 = vunpack.c.l.b16 %v331
    %v371 = vunpack.c.l.b16 %v332
    %v372 = vunpack.c.l.b16 %v333
    %v373 = vpack.c.b16 %v358, %v357
    %v374 = vpack.c.b16 %v360, %v359
    %v375 = vpack.c.b16 %v362, %v361
    %v376 = vpack.c.b16 %v364, %v363
    %v377 = vpack.c.b16 %v366, %v365
    %v378 = vpack.c.b16 %v368, %v367
    %v379 = vpack.c.b16 %v370, %v369
    %v380 = vpack.c.b16 %v372, %v371
    %389 = vmatprep.subr.bf16.mxu0 0
    %390 = vmatpush1.bf16.msra.mxu0 %v373
    %391 = vmatprep.subr.bf16.mxu0 0
    %392 = vmatpush1.bf16.msra.mxu0 %v374
    %393 = vmatprep.subr.bf16.mxu0 0
    %394 = vmatpush1.bf16.msra.mxu0 %v375
    %395 = vmatprep.subr.bf16.mxu0 0
    %396 = vmatpush1.bf16.msra.mxu0 %v376
    %397 = vmatprep.subr.bf16.mxu0 0
    %398 = vmatpush1.bf16.msra.mxu0 %v377
    %399 = vmatprep.subr.bf16.mxu0 0
    %400 = vmatpush1.bf16.msra.mxu0 %v378
    %401 = vmatprep.subr.bf16.mxu0 0
    %402 = vmatpush1.bf16.msra.mxu0 %v379
    %403 = vmatprep.subr.bf16.mxu0 0
    %404 = vmatpush1.bf16.msra.mxu0 %v380
    %405 = vmatprep.subr.bf16.mxu0 0
    %406 = vmatpush1.bf16.msra.mxu0 0
    %407 = vmatprep.subr.bf16.mxu0 0
    %408 = vmatpush1.bf16.msra.mxu0 0
    %409 = vmatprep.subr.bf16.mxu0 0
    %410 = vmatpush1.bf16.msra.mxu0 0
    %411 = vmatprep.subr.bf16.mxu0 0
    %412 = vmatpush1.bf16.msra.mxu0 0
    %413 = vmatprep.subr.bf16.mxu0 0
    %414 = vmatpush1.bf16.msra.mxu0 0
    %415 = vmatprep.subr.bf16.mxu0 0
    %416 = vmatpush1.bf16.msra.mxu0 0
    %417 = vmatprep.subr.bf16.mxu0 0
    %418 = vmatpush1.bf16.msra.mxu0 0
    %419 = vmatprep.subr.bf16.mxu0 0
    %420 = vmatpush1.bf16.msra.mxu0 0
    %421 = vmatprep.mubr.bf16.mxu0 0
    %422 = vmatmul.mubr.bf16.gmra.mrb[0].mxu0 %v317
    %v423 = vpop.f32.mrb[0].mxu0
    %v424 = vadd.f32 %v339, %v423
    %v425 = vpop.f32.mrb[0].mxu0
    %v426 = vpop.f32.mrb[0].mxu0
    %v427 = vpop.f32.mrb[0].mxu0
    %428 = vdwg.mxu0
    %v429 = vmax.f32 %v424, 0.0
    %v430 = vpack.c.bf16 %v429, %v429
    %v431 = vld [vmem:[#allocation10] sm:$0xff]
    %v432 = vld [vmem:[#allocation10 + $0x8] sm:$0xff]
    %v433 = vld [vmem:[#allocation10 + $0x10] sm:$0xff]
    %v434 = vld [vmem:[#allocation10 + $0x18] sm:$0xff]
    %v435 = vld [vmem:[#allocation10 + $0x20] sm:$0xf]
    %v436 = vld [vmem:[#allocation10 + $0x24] sm:$0xff]
    %v437 = vld [vmem:[#allocation10 + $0x2c] sm:$0xff]
    %v438 = vld [vmem:[#allocation10 + $0x34] sm:$0xff]
    %v439 = vld [vmem:[#allocation10 + $0x3c] sm:$0xff]
    %v440 = vld [vmem:[#allocation10 + $0x44] sm:$0xf]
    %v441 = vld [vmem:[#allocation10 + $0x48] sm:$0xff]
    %v442 = vld [vmem:[#allocation10 + $0x50] sm:$0xff]
    %v443 = vld [vmem:[#allocation10 + $0x58] sm:$0xff]
    %v444 = vld [vmem:[#allocation10 + $0x60] sm:$0xff]
    %v445 = vld [vmem:[#allocation10 + $0x68] sm:$0xf]
    %v446 = vld [vmem:[#allocation10 + $0x6c] sm:$0xff]
    %v447 = vld [vmem:[#allocation10 + $0x74] sm:$0xff]
    %v448 = vld [vmem:[#allocation10 + $0x7c] sm:$0xff]
    %v449 = vld [vmem:[#allocation10 + $0x84] sm:$0xff]
    %v450 = vld [vmem:[#allocation10 + $0x8c] sm:$0xf]
    %v451 = vld [vmem:[#allocation10 + $0x90] sm:$0xff]
    %v452 = vld [vmem:[#allocation10 + $0x98] sm:$0xff]
    %v453 = vld [vmem:[#allocation10 + $0xa0] sm:$0xff]
    %v454 = vld [vmem:[#allocation10 + $0xa8] sm:$0xff]
    %v455 = vld [vmem:[#allocation10 + $0xb0] sm:$0xf]
    %v456 = vld [vmem:[#allocation10 + $0xb4] sm:$0xff]
    %v457 = vld [vmem:[#allocation10 + $0xbc] sm:$0xff]
    %v458 = vld [vmem:[#allocation10 + $0xc4] sm:$0xff]
    %v459 = vld [vmem:[#allocation10 + $0xcc] sm:$0xff]
    %v460 = vld [vmem:[#allocation10 + $0xd4] sm:$0xf]
    %v461 = vld [vmem:[#allocation10 + $0xd8] sm:$0xff]
    %v462 = vld [vmem:[#allocation10 + $0xe0] sm:$0xff]
    %v463 = vld [vmem:[#allocation10 + $0xe8] sm:$0xff]
    %v464 = vld [vmem:[#allocation10 + $0xf0] sm:$0xff]
    %v465 = vld [vmem:[#allocation10 + $0xf8] sm:$0xf]
    %v466 = vld [vmem:[#allocation10 + $0xfc] sm:$0xff]
    %v467 = vld [vmem:[#allocation10 + $0x104] sm:$0xff]
    %v468 = vld [vmem:[#allocation10 + $0x10c] sm:$0xff]
    %v469 = vld [vmem:[#allocation10 + $0x114] sm:$0xff]
    %v470 = vld [vmem:[#allocation10 + $0x11c] sm:$0xf]
    %v471 = vld [vmem:[#allocation10 + $0x120] sm:$0xff]
    %v472 = vld [vmem:[#allocation10 + $0x128] sm:$0xff]
    %v473 = vld [vmem:[#allocation10 + $0x130] sm:$0xff]
    %v474 = vld [vmem:[#allocation10 + $0x138] sm:$0xff]
    %v475 = vld [vmem:[#allocation10 + $0x140] sm:$0xf]
    %v476 = vld [vmem:[#allocation10 + $0x144] sm:$0xff]
    %v477 = vld [vmem:[#allocation10 + $0x14c] sm:$0xff]
    %v478 = vld [vmem:[#allocation10 + $0x154] sm:$0xff]
    %v479 = vld [vmem:[#allocation10 + $0x15c] sm:$0xff]
    %v480 = vld [vmem:[#allocation10 + $0x164] sm:$0xf]
    %v481 = vld [vmem:[#allocation10 + $0x168] sm:$0xff]
    %v482 = vld [vmem:[#allocation10 + $0x170] sm:$0xff]
    %v483 = vld [vmem:[#allocation10 + $0x178] sm:$0xff]
    %v484 = vld [vmem:[#allocation10 + $0x180] sm:$0xff]
    %v485 = vld [vmem:[#allocation10 + $0x188] sm:$0xf]
    %v486 = vld [vmem:[#allocation10 + $0x18c] sm:$0xff]
    %v487 = vld [vmem:[#allocation10 + $0x194] sm:$0xff]
    %v488 = vld [vmem:[#allocation10 + $0x19c] sm:$0xff]
    %v489 = vld [vmem:[#allocation10 + $0x1a4] sm:$0xff]
    %v490 = vld [vmem:[#allocation10 + $0x1ac] sm:$0xf]
    %v491 = vld [vmem:[#allocation10 + $0x1b0] sm:$0xff]
    %v492 = vld [vmem:[#allocation10 + $0x1b8] sm:$0xff]
    %v493 = vld [vmem:[#allocation10 + $0x1c0] sm:$0xff]
    %v494 = vld [vmem:[#allocation10 + $0x1c8] sm:$0xff]
    %v495 = vld [vmem:[#allocation10 + $0x1d0] sm:$0xf]
    %v496 = vld [vmem:[#allocation10 + $0x1d4] sm:$0xff]
    %v497 = vld [vmem:[#allocation10 + $0x1dc] sm:$0xff]
    %v498 = vld [vmem:[#allocation10 + $0x1e4] sm:$0xff]
    %v499 = vld [vmem:[#allocation10 + $0x1ec] sm:$0xff]
    %v500 = vld [vmem:[#allocation10 + $0x1f4] sm:$0xf]
    %v501 = vld [vmem:[#allocation10 + $0x1f8] sm:$0xff]
    %v502 = vld [vmem:[#allocation10 + $0x200] sm:$0xff]
    %v503 = vld [vmem:[#allocation10 + $0x208] sm:$0xff]
    %v504 = vld [vmem:[#allocation10 + $0x210] sm:$0xff]
    %v505 = vld [vmem:[#allocation10 + $0x218] sm:$0xf]
    %v506 = vld [vmem:[#allocation10 + $0x21c] sm:$0xff]
    %v507 = vld [vmem:[#allocation10 + $0x224] sm:$0xff]
    %v508 = vld [vmem:[#allocation10 + $0x22c] sm:$0xff]
    %v509 = vld [vmem:[#allocation10 + $0x234] sm:$0xff]
    %v510 = vld [vmem:[#allocation10 + $0x23c] sm:$0xf]
    %v511 = vld [vmem:[%s8] sm:$0xff]
    %v512 = vld [vmem:[%s8 + $0x8] sm:$0x1]
    %v515 = vlaneseq
    %v516 = vshrl.u32 %v515, 7
    %v517 = vsub.s32 0, %v516
    %v518 = vrot.slane %v511, %v517
    %v519 = vlaneseq
    %v520 = vshrl.u32 %v519, 7
    %v521 = vsub.s32 1, %v520
    %v522 = vrot.slane %v511, %v521
    %v523 = vlaneseq
    %v524 = vshrl.u32 %v523, 7
    %v525 = vsub.s32 2, %v524
    %v526 = vrot.slane %v511, %v525
    %v527 = vlaneseq
    %v528 = vshrl.u32 %v527, 7
    %v529 = vsub.s32 3, %v528
    %v530 = vrot.slane %v511, %v529
    %v531 = vlaneseq
    %v532 = vshrl.u32 %v531, 7
    %v533 = vsub.s32 4, %v532
    %v534 = vrot.slane %v511, %v533
    %v535 = vlaneseq
    %v536 = vshrl.u32 %v535, 7
    %v537 = vsub.s32 5, %v536
    %v538 = vrot.slane %v511, %v537
    %v539 = vlaneseq
    %v540 = vshrl.u32 %v539, 7
    %v541 = vsub.s32 6, %v540
    %v542 = vrot.slane %v511, %v541
    %v543 = vlaneseq
    %v544 = vshrl.u32 %v543, 7
    %v545 = vsub.s32 7, %v544
    %v546 = vrot.slane %v511, %v545
    %v547 = vlaneseq
    %v548 = vshrl.u32 %v547, 7
    %v549 = vsub.s32 0, %v548
    %v550 = vrot.slane %v512, %v549
    %v640 = vunpack.c.l.b16 %v431
    %v641 = vunpack.c.h.b16 %v431
    %v642 = vunpack.c.l.b16 %v432
    %v643 = vunpack.c.h.b16 %v432
    %v644 = vunpack.c.l.b16 %v433
    %v645 = vunpack.c.h.b16 %v433
    %v646 = vunpack.c.l.b16 %v434
    %v647 = vunpack.c.h.b16 %v434
    %v648 = vunpack.c.l.b16 %v435
    %v649 = vunpack.c.l.b16 %v436
    %v650 = vunpack.c.h.b16 %v436
    %v651 = vunpack.c.l.b16 %v437
    %v652 = vunpack.c.h.b16 %v437
    %v653 = vunpack.c.l.b16 %v438
    %v654 = vunpack.c.h.b16 %v438
    %v655 = vunpack.c.l.b16 %v439
    %v656 = vunpack.c.h.b16 %v439
    %v657 = vunpack.c.l.b16 %v440
    %v658 = vunpack.c.l.b16 %v441
    %v659 = vunpack.c.h.b16 %v441
    %v660 = vunpack.c.l.b16 %v442
    %v661 = vunpack.c.h.b16 %v442
    %v662 = vunpack.c.l.b16 %v443
    %v663 = vunpack.c.h.b16 %v443
    %v664 = vunpack.c.l.b16 %v444
    %v665 = vunpack.c.h.b16 %v444
    %v666 = vunpack.c.l.b16 %v445
    %v667 = vunpack.c.l.b16 %v446
    %v668 = vunpack.c.h.b16 %v446
    %v669 = vunpack.c.l.b16 %v447
    %v670 = vunpack.c.h.b16 %v447
    %v671 = vunpack.c.l.b16 %v448
    %v672 = vunpack.c.h.b16 %v448
    %v673 = vunpack.c.l.b16 %v449
    %v674 = vunpack.c.h.b16 %v449
    %v675 = vunpack.c.l.b16 %v450
    %v676 = vunpack.c.l.b16 %v451
    %v677 = vunpack.c.h.b16 %v451
    %v678 = vunpack.c.l.b16 %v452
    %v679 = vunpack.c.h.b16 %v452
    %v680 = vunpack.c.l.b16 %v453
    %v681 = vunpack.c.h.b16 %v453
    %v682 = vunpack.c.l.b16 %v454
    %v683 = vunpack.c.h.b16 %v454
    %v684 = vunpack.c.l.b16 %v455
    %v685 = vunpack.c.l.b16 %v456
    %v686 = vunpack.c.h.b16 %v456
    %v687 = vunpack.c.l.b16 %v457
    %v688 = vunpack.c.h.b16 %v457
    %v689 = vunpack.c.l.b16 %v458
    %v690 = vunpack.c.h.b16 %v458
    %v691 = vunpack.c.l.b16 %v459
    %v692 = vunpack.c.h.b16 %v459
    %v693 = vunpack.c.l.b16 %v460
    %v694 = vunpack.c.l.b16 %v461
    %v695 = vunpack.c.h.b16 %v461
    %v696 = vunpack.c.l.b16 %v462
    %v697 = vunpack.c.h.b16 %v462
    %v698 = vunpack.c.l.b16 %v463
    %v699 = vunpack.c.h.b16 %v463
    %v700 = vunpack.c.l.b16 %v464
    %v701 = vunpack.c.h.b16 %v464
    %v702 = vunpack.c.l.b16 %v465
    %v703 = vunpack.c.l.b16 %v466
    %v704 = vunpack.c.h.b16 %v466
    %v705 = vunpack.c.l.b16 %v467
    %v706 = vunpack.c.h.b16 %v467
    %v707 = vunpack.c.l.b16 %v468
    %v708 = vunpack.c.h.b16 %v468
    %v709 = vunpack.c.l.b16 %v469
    %v710 = vunpack.c.h.b16 %v469
    %v711 = vunpack.c.l.b16 %v470
    %v712 = vunpack.c.l.b16 %v471
    %v713 = vunpack.c.h.b16 %v471
    %v714 = vunpack.c.l.b16 %v472
    %v715 = vunpack.c.h.b16 %v472
    %v716 = vunpack.c.l.b16 %v473
    %v717 = vunpack.c.h.b16 %v473
    %v718 = vunpack.c.l.b16 %v474
    %v719 = vunpack.c.h.b16 %v474
    %v720 = vunpack.c.l.b16 %v475
    %v721 = vunpack.c.l.b16 %v476
    %v722 = vunpack.c.h.b16 %v476
    %v723 = vunpack.c.l.b16 %v477
    %v724 = vunpack.c.h.b16 %v477
    %v725 = vunpack.c.l.b16 %v478
    %v726 = vunpack.c.h.b16 %v478
    %v727 = vunpack.c.l.b16 %v479
    %v728 = vunpack.c.h.b16 %v479
    %v729 = vunpack.c.l.b16 %v480
    %v730 = vunpack.c.l.b16 %v481
    %v731 = vunpack.c.h.b16 %v481
    %v732 = vunpack.c.l.b16 %v482
    %v733 = vunpack.c.h.b16 %v482
    %v734 = vunpack.c.l.b16 %v483
    %v735 = vunpack.c.h.b16 %v483
    %v736 = vunpack.c.l.b16 %v484
    %v737 = vunpack.c.h.b16 %v484
    %v738 = vunpack.c.l.b16 %v485
    %v739 = vunpack.c.l.b16 %v486
    %v740 = vunpack.c.h.b16 %v486
    %v741 = vunpack.c.l.b16 %v487
    %v742 = vunpack.c.h.b16 %v487
    %v743 = vunpack.c.l.b16 %v488
    %v744 = vunpack.c.h.b16 %v488
    %v745 = vunpack.c.l.b16 %v489
    %v746 = vunpack.c.h.b16 %v489
    %v747 = vunpack.c.l.b16 %v490
    %v748 = vunpack.c.l.b16 %v491
    %v749 = vunpack.c.h.b16 %v491
    %v750 = vunpack.c.l.b16 %v492
    %v751 = vunpack.c.h.b16 %v492
    %v752 = vunpack.c.l.b16 %v493
    %v753 = vunpack.c.h.b16 %v493
    %v754 = vunpack.c.l.b16 %v494
    %v755 = vunpack.c.h.b16 %v494
    %v756 = vunpack.c.l.b16 %v495
    %v757 = vunpack.c.l.b16 %v496
    %v758 = vunpack.c.h.b16 %v496
    %v759 = vunpack.c.l.b16 %v497
    %v760 = vunpack.c.h.b16 %v497
    %v761 = vunpack.c.l.b16 %v498
    %v762 = vunpack.c.h.b16 %v498
    %v763 = vunpack.c.l.b16 %v499
    %v764 = vunpack.c.h.b16 %v499
    %v765 = vunpack.c.l.b16 %v500
    %v766 = vunpack.c.l.b16 %v501
    %v767 = vunpack.c.h.b16 %v501
    %v768 = vunpack.c.l.b16 %v502
    %v769 = vunpack.c.h.b16 %v502
    %v770 = vunpack.c.l.b16 %v503
    %v771 = vunpack.c.h.b16 %v503
    %v772 = vunpack.c.l.b16 %v504
    %v773 = vunpack.c.h.b16 %v504
    %v774 = vunpack.c.l.b16 %v505
    %v775 = vunpack.c.l.b16 %v506
    %v776 = vunpack.c.h.b16 %v506
    %v777 = vunpack.c.l.b16 %v507
    %v778 = vunpack.c.h.b16 %v507
    %v779 = vunpack.c.l.b16 %v508
    %v780 = vunpack.c.h.b16 %v508
    %v781 = vunpack.c.l.b16 %v509
    %v782 = vunpack.c.h.b16 %v509
    %v783 = vunpack.c.l.b16 %v510
    %v784 = vpack.c.b16 %v649, %v640
    %v785 = vpack.c.b16 %v650, %v641
    %v786 = vpack.c.b16 %v651, %v642
    %v787 = vpack.c.b16 %v652, %v643
    %v788 = vpack.c.b16 %v653, %v644
    %v789 = vpack.c.b16 %v654, %v645
    %v790 = vpack.c.b16 %v655, %v646
    %v791 = vpack.c.b16 %v656, %v647
    %v792 = vpack.c.b16 %v657, %v648
    %v793 = vpack.c.b16 %v667, %v658
    %v794 = vpack.c.b16 %v668, %v659
    %v795 = vpack.c.b16 %v669, %v660
    %v796 = vpack.c.b16 %v670, %v661
    %v797 = vpack.c.b16 %v671, %v662
    %v798 = vpack.c.b16 %v672, %v663
    %v799 = vpack.c.b16 %v673, %v664
    %v800 = vpack.c.b16 %v674, %v665
    %v801 = vpack.c.b16 %v675, %v666
    %v802 = vpack.c.b16 %v685, %v676
    %v803 = vpack.c.b16 %v686, %v677
    %v804 = vpack.c.b16 %v687, %v678
    %v805 = vpack.c.b16 %v688, %v679
    %v806 = vpack.c.b16 %v689, %v680
    %v807 = vpack.c.b16 %v690, %v681
    %v808 = vpack.c.b16 %v691, %v682
    %v809 = vpack.c.b16 %v692, %v683
    %v810 = vpack.c.b16 %v693, %v684
    %v811 = vpack.c.b16 %v703, %v694
    %v812 = vpack.c.b16 %v704, %v695
    %v813 = vpack.c.b16 %v705, %v696
    %v814 = vpack.c.b16 %v706, %v697
    %v815 = vpack.c.b16 %v707, %v698
    %v816 = vpack.c.b16 %v708, %v699
    %v817 = vpack.c.b16 %v709, %v700
    %v818 = vpack.c.b16 %v710, %v701
    %v819 = vpack.c.b16 %v711, %v702
    %v820 = vpack.c.b16 %v721, %v712
    %v821 = vpack.c.b16 %v722, %v713
    %v822 = vpack.c.b16 %v723, %v714
    %v823 = vpack.c.b16 %v724, %v715
    %v824 = vpack.c.b16 %v725, %v716
    %v825 = vpack.c.b16 %v726, %v717
    %v826 = vpack.c.b16 %v727, %v718
    %v827 = vpack.c.b16 %v728, %v719
    %v828 = vpack.c.b16 %v729, %v720
    %v829 = vpack.c.b16 %v739, %v730
    %v830 = vpack.c.b16 %v740, %v731
    %v831 = vpack.c.b16 %v741, %v732
    %v832 = vpack.c.b16 %v742, %v733
    %v833 = vpack.c.b16 %v743, %v734
    %v834 = vpack.c.b16 %v744, %v735
    %v835 = vpack.c.b16 %v745, %v736
    %v836 = vpack.c.b16 %v746, %v737
    %v837 = vpack.c.b16 %v747, %v738
    %v838 = vpack.c.b16 %v757, %v748
    %v839 = vpack.c.b16 %v758, %v749
    %v840 = vpack.c.b16 %v759, %v750
    %v841 = vpack.c.b16 %v760, %v751
    %v842 = vpack.c.b16 %v761, %v752
    %v843 = vpack.c.b16 %v762, %v753
    %v844 = vpack.c.b16 %v763, %v754
    %v845 = vpack.c.b16 %v764, %v755
    %v846 = vpack.c.b16 %v765, %v756
    %v847 = vpack.c.b16 %v775, %v766
    %v848 = vpack.c.b16 %v776, %v767
    %v849 = vpack.c.b16 %v777, %v768
    %v850 = vpack.c.b16 %v778, %v769
    %v851 = vpack.c.b16 %v779, %v770
    %v852 = vpack.c.b16 %v780, %v771
    %v853 = vpack.c.b16 %v781, %v772
    %v854 = vpack.c.b16 %v782, %v773
    %v855 = vpack.c.b16 %v783, %v774
    %928 = vmatprep.subr.bf16.mxu0 %v785
    %929 = vmatpush1.bf16.msra.mxu0 %v784
    %930 = vmatprep.subr.bf16.mxu0 %v794
    %931 = vmatpush1.bf16.msra.mxu0 %v793
    %932 = vmatprep.subr.bf16.mxu0 %v803
    %933 = vmatpush1.bf16.msra.mxu0 %v802
    %934 = vmatprep.subr.bf16.mxu0 %v812
    %935 = vmatpush1.bf16.msra.mxu0 %v811
    %936 = vmatprep.subr.bf16.mxu0 %v821
    %937 = vmatpush1.bf16.msra.mxu0 %v820
    %938 = vmatprep.subr.bf16.mxu0 %v830
    %939 = vmatpush1.bf16.msra.mxu0 %v829
    %940 = vmatprep.subr.bf16.mxu0 %v839
    %941 = vmatpush1.bf16.msra.mxu0 %v838
    %942 = vmatprep.subr.bf16.mxu0 %v848
    %943 = vmatpush1.bf16.msra.mxu0 %v847
    %944 = vmatprep.subr.bf16.mxu0 0
    %945 = vmatpush1.bf16.msra.mxu0 0
    %946 = vmatprep.subr.bf16.mxu0 0
    %947 = vmatpush1.bf16.msra.mxu0 0
    %948 = vmatprep.subr.bf16.mxu0 0
    %949 = vmatpush1.bf16.msra.mxu0 0
    %950 = vmatprep.subr.bf16.mxu0 0
    %951 = vmatpush1.bf16.msra.mxu0 0
    %952 = vmatprep.subr.bf16.mxu0 0
    %953 = vmatpush1.bf16.msra.mxu0 0
    %954 = vmatprep.subr.bf16.mxu0 0
    %955 = vmatpush1.bf16.msra.mxu0 0
    %956 = vmatprep.subr.bf16.mxu0 0
    %957 = vmatpush1.bf16.msra.mxu0 0
    %958 = vmatprep.subr.bf16.mxu0 0
    %959 = vmatpush1.bf16.msra.mxu0 0
    %960 = vmatprep.mubr.bf16.mxu0 0
    %961 = vmatmul.mubr.bf16.gmra.mrb[0].mxu0 %v430
    %v962 = vpop.f32.mrb[0].mxu0
    %v963 = vadd.f32 %v518, %v962
    %v964 = vpop.f32.mrb[0].mxu0
    %v965 = vadd.f32 %v522, %v964
    %v966 = vpop.f32.mrb[0].mxu0
    %v967 = vpop.f32.mrb[0].mxu0
    %968 = vdwg.mxu0
    %969 = vmatprep.subr.bf16.mxu0 %v787
    %970 = vmatpush1.bf16.msra.mxu0 %v786
    %971 = vmatprep.subr.bf16.mxu0 %v796
    %972 = vmatpush1.bf16.msra.mxu0 %v795
    %973 = vmatprep.subr.bf16.mxu0 %v805
    %974 = vmatpush1.bf16.msra.mxu0 %v804
    %975 = vmatprep.subr.bf16.mxu0 %v814
    %976 = vmatpush1.bf16.msra.mxu0 %v813
    %977 = vmatprep.subr.bf16.mxu0 %v823
    %978 = vmatpush1.bf16.msra.mxu0 %v822
    %979 = vmatprep.subr.bf16.mxu0 %v832
    %980 = vmatpush1.bf16.msra.mxu0 %v831
    %981 = vmatprep.subr.bf16.mxu0 %v841
    %982 = vmatpush1.bf16.msra.mxu0 %v840
    %983 = vmatprep.subr.bf16.mxu0 %v850
    %984 = vmatpush1.bf16.msra.mxu0 %v849
    %985 = vmatprep.subr.bf16.mxu0 0
    %986 = vmatpush1.bf16.msra.mxu0 0
    %987 = vmatprep.subr.bf16.mxu0 0
    %988 = vmatpush1.bf16.msra.mxu0 0
    %989 = vmatprep.subr.bf16.mxu0 0
    %990 = vmatpush1.bf16.msra.mxu0 0
    %991 = vmatprep.subr.bf16.mxu0 0
    %992 = vmatpush1.bf16.msra.mxu0 0
    %993 = vmatprep.subr.bf16.mxu0 0
    %994 = vmatpush1.bf16.msra.mxu0 0
    %995 = vmatprep.subr.bf16.mxu0 0
    %996 = vmatpush1.bf16.msra.mxu0 0
    %997 = vmatprep.subr.bf16.mxu0 0
    %998 = vmatpush1.bf16.msra.mxu0 0
    %999 = vmatprep.subr.bf16.mxu0 0
    %1000 = vmatpush1.bf16.msra.mxu0 0
    %1001 = vmatprep.mubr.bf16.mxu0 0
    %1002 = vmatmul.mubr.bf16.gmra.mrb[0].mxu0 %v430
    %v1003 = vpop.f32.mrb[0].mxu0
    %v1004 = vadd.f32 %v526, %v1003
    %v1005 = vpop.f32.mrb[0].mxu0
    %v1006 = vadd.f32 %v530, %v1005
    %v1007 = vpop.f32.mrb[0].mxu0
    %v1008 = vpop.f32.mrb[0].mxu0
    %1009 = vdwg.mxu0
    %1010 = vmatprep.subr.bf16.mxu0 %v789
    %1011 = vmatpush1.bf16.msra.mxu0 %v788
    %1012 = vmatprep.subr.bf16.mxu0 %v798
    %1013 = vmatpush1.bf16.msra.mxu0 %v797
    %1014 = vmatprep.subr.bf16.mxu0 %v807
    %1015 = vmatpush1.bf16.msra.mxu0 %v806
    %1016 = vmatprep.subr.bf16.mxu0 %v816
    %1017 = vmatpush1.bf16.msra.mxu0 %v815
    %1018 = vmatprep.subr.bf16.mxu0 %v825
    %1019 = vmatpush1.bf16.msra.mxu0 %v824
    %1020 = vmatprep.subr.bf16.mxu0 %v834
    %1021 = vmatpush1.bf16.msra.mxu0 %v833
    %1022 = vmatprep.subr.bf16.mxu0 %v843
    %1023 = vmatpush1.bf16.msra.mxu0 %v842
    %1024 = vmatprep.subr.bf16.mxu0 %v852
    %1025 = vmatpush1.bf16.msra.mxu0 %v851
    %1026 = vmatprep.subr.bf16.mxu0 0
    %1027 = vmatpush1.bf16.msra.mxu0 0
    %1028 = vmatprep.subr.bf16.mxu0 0
    %1029 = vmatpush1.bf16.msra.mxu0 0
    %1030 = vmatprep.subr.bf16.mxu0 0
    %1031 = vmatpush1.bf16.msra.mxu0 0
    %1032 = vmatprep.subr.bf16.mxu0 0
    %1033 = vmatpush1.bf16.msra.mxu0 0
    %1034 = vmatprep.subr.bf16.mxu0 0
    %1035 = vmatpush1.bf16.msra.mxu0 0
    %1036 = vmatprep.subr.bf16.mxu0 0
    %1037 = vmatpush1.bf16.msra.mxu0 0
    %1038 = vmatprep.subr.bf16.mxu0 0
    %1039 = vmatpush1.bf16.msra.mxu0 0
    %1040 = vmatprep.subr.bf16.mxu0 0
    %1041 = vmatpush1.bf16.msra.mxu0 0
    %1042 = vmatprep.mubr.bf16.mxu0 0
    %1043 = vmatmul.mubr.bf16.gmra.mrb[0].mxu0 %v430
    %v1044 = vpop.f32.mrb[0].mxu0
    %v1045 = vadd.f32 %v534, %v1044
    %v1046 = vpop.f32.mrb[0].mxu0
    %v1047 = vadd.f32 %v538, %v1046
    %v1048 = vpop.f32.mrb[0].mxu0
    %v1049 = vpop.f32.mrb[0].mxu0
    %1050 = vdwg.mxu0
    %1051 = vmatprep.subr.bf16.mxu0 %v791
    %1052 = vmatpush1.bf16.msra.mxu0 %v790
    %1053 = vmatprep.subr.bf16.mxu0 %v800
    %1054 = vmatpush1.bf16.msra.mxu0 %v799
    %1055 = vmatprep.subr.bf16.mxu0 %v809
    %1056 = vmatpush1.bf16.msra.mxu0 %v808
    %1057 = vmatprep.subr.bf16.mxu0 %v818
    %1058 = vmatpush1.bf16.msra.mxu0 %v817
    %1059 = vmatprep.subr.bf16.mxu0 %v827
    %1060 = vmatpush1.bf16.msra.mxu0 %v826
    %1061 = vmatprep.subr.bf16.mxu0 %v836
    %1062 = vmatpush1.bf16.msra.mxu0 %v835
    %1063 = vmatprep.subr.bf16.mxu0 %v845
    %1064 = vmatpush1.bf16.msra.mxu0 %v844
    %1065 = vmatprep.subr.bf16.mxu0 %v854
    %1066 = vmatpush1.bf16.msra.mxu0 %v853
    %1067 = vmatprep.subr.bf16.mxu0 0
    %1068 = vmatpush1.bf16.msra.mxu0 0
    %1069 = vmatprep.subr.bf16.mxu0 0
    %1070 = vmatpush1.bf16.msra.mxu0 0
    %1071 = vmatprep.subr.bf16.mxu0 0
    %1072 = vmatpush1.bf16.msra.mxu0 0
    %1073 = vmatprep.subr.bf16.mxu0 0
    %1074 = vmatpush1.bf16.msra.mxu0 0
    %1075 = vmatprep.subr.bf16.mxu0 0
    %1076 = vmatpush1.bf16.msra.mxu0 0
    %1077 = vmatprep.subr.bf16.mxu0 0
    %1078 = vmatpush1.bf16.msra.mxu0 0
    %1079 = vmatprep.subr.bf16.mxu0 0
    %1080 = vmatpush1.bf16.msra.mxu0 0
    %1081 = vmatprep.subr.bf16.mxu0 0
    %1082 = vmatpush1.bf16.msra.mxu0 0
    %1083 = vmatprep.mubr.bf16.mxu0 0
    %1084 = vmatmul.mubr.bf16.gmra.mrb[0].mxu0 %v430
    %v1085 = vpop.f32.mrb[0].mxu0
    %v1086 = vadd.f32 %v542, %v1085
    %v1087 = vpop.f32.mrb[0].mxu0
    %v1088 = vadd.f32 %v546, %v1087
    %v1089 = vpop.f32.mrb[0].mxu0
    %v1090 = vpop.f32.mrb[0].mxu0
    %1091 = vdwg.mxu0
    %1092 = vmatprep.subr.bf16.mxu0 0
    %1093 = vmatpush1.bf16.msra.mxu0 %v792
    %1094 = vmatprep.subr.bf16.mxu0 0
    %1095 = vmatpush1.bf16.msra.mxu0 %v801
    %1096 = vmatprep.subr.bf16.mxu0 0
    %1097 = vmatpush1.bf16.msra.mxu0 %v810
    %1098 = vmatprep.subr.bf16.mxu0 0
    %1099 = vmatpush1.bf16.msra.mxu0 %v819
    %1100 = vmatprep.subr.bf16.mxu0 0
    %1101 = vmatpush1.bf16.msra.mxu0 %v828
    %1102 = vmatprep.subr.bf16.mxu0 0
    %1103 = vmatpush1.bf16.msra.mxu0 %v837
    %1104 = vmatprep.subr.bf16.mxu0 0
    %1105 = vmatpush1.bf16.msra.mxu0 %v846
    %1106 = vmatprep.subr.bf16.mxu0 0
    %1107 = vmatpush1.bf16.msra.mxu0 %v855
    %1108 = vmatprep.subr.bf16.mxu0 0
    %1109 = vmatpush1.bf16.msra.mxu0 0
    %1110 = vmatprep.subr.bf16.mxu0 0
    %1111 = vmatpush1.bf16.msra.mxu0 0
    %1112 = vmatprep.subr.bf16.mxu0 0
    %1113 = vmatpush1.bf16.msra.mxu0 0
    %1114 = vmatprep.subr.bf16.mxu0 0
    %1115 = vmatpush1.bf16.msra.mxu0 0
    %1116 = vmatprep.subr.bf16.mxu0 0
    %1117 = vmatpush1.bf16.msra.mxu0 0
    %1118 = vmatprep.subr.bf16.mxu0 0
    %1119 = vmatpush1.bf16.msra.mxu0 0
    %1120 = vmatprep.subr.bf16.mxu0 0
    %1121 = vmatpush1.bf16.msra.mxu0 0
    %1122 = vmatprep.subr.bf16.mxu0 0
    %1123 = vmatpush1.bf16.msra.mxu0 0
    %1124 = vmatprep.mubr.bf16.mxu0 0
    %1125 = vmatmul.mubr.bf16.gmra.mrb[0].mxu0 %v430
    %v1126 = vpop.f32.mrb[0].mxu0
    %v1127 = vadd.f32 %v550, %v1126
    %v1128 = vpop.f32.mrb[0].mxu0
    %v1129 = vpop.f32.mrb[0].mxu0
    %v1130 = vpop.f32.mrb[0].mxu0
    %1131 = vdwg.mxu0
    %v1132 = vmax.f32 %v963, %v965
    %v1133 = vmax.f32 %v1132, %v1004
    %v1134 = vmax.f32 %v1133, %v1006
    %v1135 = vmax.f32 %v1134, %v1045
    %v1136 = vmax.f32 %v1135, %v1047
    %v1137 = vmax.f32 %v1136, %v1086
    %v1138 = vmax.f32 %v1137, %v1088
    %v1139 = vmax.f32 %v1138, %v1127
    %v1140 = vsub.f32 %v963, %v1139
    %v1141 = vmul.f32 %v1140, 1.442695
    %v1142 = vpow.pop %v1141
    %1143 = vst [vmem:[#allocation11] sm:$0xff] %v1142
    %v1144 = vadd.f32 %v1142, 0.0
    %v1145 = vsub.f32 %v965, %v1139
    %v1146 = vmul.f32 %v1145, 1.442695
    %v1147 = vpow.pop %v1146
    %1148 = vst [vmem:[#allocation11 + $0x8] sm:$0xff] %v1147
    %v1149 = vadd.f32 %v1144, %v1147
    %v1150 = vsub.f32 %v1004, %v1139
    %v1151 = vmul.f32 %v1150, 1.442695
    %v1152 = vpow.pop %v1151
    %1153 = vst [vmem:[#allocation11 + $0x10] sm:$0xff] %v1152
    %v1154 = vadd.f32 %v1149, %v1152
    %v1155 = vsub.f32 %v1006, %v1139
    %v1156 = vmul.f32 %v1155, 1.442695
    %v1157 = vpow.pop %v1156
    %1158 = vst [vmem:[#allocation11 + $0x18] sm:$0xff] %v1157
    %v1159 = vadd.f32 %v1154, %v1157
    %v1160 = vsub.f32 %v1045, %v1139
    %v1161 = vmul.f32 %v1160, 1.442695
    %v1162 = vpow.pop %v1161
    %1163 = vst [vmem:[#allocation11 + $0x20] sm:$0xff] %v1162
    %v1164 = vadd.f32 %v1159, %v1162
    %v1165 = vsub.f32 %v1047, %v1139
    %v1166 = vmul.f32 %v1165, 1.442695
    %v1167 = vpow.pop %v1166
    %1168 = vst [vmem:[#allocation11 + $0x28] sm:$0xff] %v1167
    %v1169 = vadd.f32 %v1164, %v1167
    %v1170 = vsub.f32 %v1086, %v1139
    %v1171 = vmul.f32 %v1170, 1.442695
    %v1172 = vpow.pop %v1171
    %1173 = vst [vmem:[#allocation11 + $0x30] sm:$0xff] %v1172
    %v1174 = vadd.f32 %v1169, %v1172
    %v1175 = vsub.f32 %v1088, %v1139
    %v1176 = vmul.f32 %v1175, 1.442695
    %v1177 = vpow.pop %v1176
    %1178 = vst [vmem:[#allocation11 + $0x38] sm:$0xff] %v1177
    %v1179 = vadd.f32 %v1174, %v1177
    %v1180 = vsub.f32 %v1127, %v1139
    %v1181 = vmul.f32 %v1180, 1.442695
    %v1182 = vpow.pop %v1181
    %1183 = vst [vmem:[#allocation11 + $0x40] sm:$0xff] %v1182
    %v1184 = vadd.f32 %v1179, %v1182
    %v1185 = vrcp.pop %v1184
    %v1186 = vmul.f32 %v1184, %v1185
    %v1187 = vsub.f32 2.0, %v1186
    %v1188 = vmul.f32 %v1185, %v1187
    %v1189 = vld [vmem:[#allocation11] sm:$0xff]
    %v1190 = vmul.f32 %v1189, %v1188
    %1191 = vst [vmem:[#allocation11] sm:$0xff] %v1190
    %v1192 = vld [vmem:[#allocation11 + $0x8] sm:$0xff]
    %v1193 = vmul.f32 %v1192, %v1188
    %1194 = vst [vmem:[#allocation11 + $0x8] sm:$0xff] %v1193
    %v1195 = vld [vmem:[#allocation11 + $0x10] sm:$0xff]
    %v1196 = vmul.f32 %v1195, %v1188
    %1197 = vst [vmem:[#allocation11 + $0x10] sm:$0xff] %v1196
    %v1198 = vld [vmem:[#allocation11 + $0x18] sm:$0xff]
    %v1199 = vmul.f32 %v1198, %v1188
    %1200 = vst [vmem:[#allocation11 + $0x18] sm:$0xff] %v1199
    %v1201 = vld [vmem:[#allocation11 + $0x20] sm:$0xff]
    %v1202 = vmul.f32 %v1201, %v1188
    %1203 = vst [vmem:[#allocation11 + $0x20] sm:$0xff] %v1202
    %v1204 = vld [vmem:[#allocation11 + $0x28] sm:$0xff]
    %v1205 = vmul.f32 %v1204, %v1188
    %1206 = vst [vmem:[#allocation11 + $0x28] sm:$0xff] %v1205
    %v1207 = vld [vmem:[#allocation11 + $0x30] sm:$0xff]
    %v1208 = vmul.f32 %v1207, %v1188
    %1209 = vst [vmem:[#allocation11 + $0x30] sm:$0xff] %v1208
    %v1210 = vld [vmem:[#allocation11 + $0x38] sm:$0xff]
    %v1211 = vmul.f32 %v1210, %v1188
    %1212 = vst [vmem:[#allocation11 + $0x38] sm:$0xff] %v1211
    %v1213 = vld [vmem:[#allocation11 + $0x40] sm:$0xff]
    %v1214 = vmul.f32 %v1213, %v1188
    %1215 = vst [vmem:[#allocation11 + $0x40] sm:$0xff] %v1214
    // Predicated region
    $region58: #{tpu_custom_call.1} parent=1 // pred_check
      _
    $region59: #{tpu_custom_call.1} parent=1 // pred_check_branch
      %1217 = sbr.rel (0) target = $region61
    $region60: #{tpu_custom_call.1} parent=1 // pred_region
      %s1219 = ssub.s32 1152, 1152
      %1220 = vsyncadd [#allocation4], %s1219
      %s1222 = sshll.u32 [#allocation11], 4
      %s1223 = int_to_ptr.vmem [resolvable:$true] %s1222
      %1225 = dma.vmem_to_hbm [thread:$0]  %s1223, 1152, %s9, [#allocation4]
    $region61: #{tpu_custom_call.1} parent=1 // pred_fallthru
      _
    // Predicated region
    $region62: #{tpu_custom_call.1} parent=1 // pred_check
      _
    $region63: #{tpu_custom_call.1} parent=1 // pred_check_branch
      %1227 = sbr.rel (0) target = $region65
    $region64: #{tpu_custom_call.1} parent=1 // pred_region
      %1228 = dma.done [#allocation4], 1152
    $region65: #{tpu_custom_call.1} parent=1 // pred_fallthru
      _
    %1229 = vsyncpa [#allocation3], 1
    %1230 = vsyncpa [#allocation6], 1
    %1231 = vsyncpa [#allocation9], 1
    %1232 = vsyncpa [#allocation4], 1

</llo_original>
